<compile_context>
chip_gen: v7x
topology: tpu7x:2x2x1
jax: 0.10.0
libtpu: 0.0.40
codegen_flags: <defaults>
</compile_context>

<pallas_src>
import jax
import jax.numpy as jnp
from jax.experimental import pallas as pl
from jax.experimental.pallas import tpu as pltpu


IN_DIM = 28 * 28    # 784
HID = 512
OUT_DIM = 10
OUT_PAD = 128       # lane-dense padded logits width
TILE_B_MAX = 1024   # large tile amortizes ~0.35 us/step grid overhead


def _round_up(n: int, m: int) -> int:
    return ((n + m - 1) // m) * m


def _choose_tile_b(B: int) -> int:
    """Batch tile: multiple of 8 (sublane), <= TILE_B_MAX, sized so the ragged
    last tile is nearly full, and >= 2 tiles when B >= 16 (v7x megacore)."""
    if B <= 8:
        return B  # single full-extent block (no 8-alignment needed)
    n_tiles = max(pl.cdiv(B, TILE_B_MAX), 2)
    return min(_round_up(pl.cdiv(B, n_tiles), 8), TILE_B_MAX)


def mlp_kernel(x_ref, w1_ref, b1_ref, w2_ref, b2_ref, w3_ref, b3_ref, o_ref):
    """Fused 3-layer MLP on one batch tile.

    x_ref: (tile_b, 784) bf16 (cast is a no-op if already bf16)
    w*:    bf16 (in, out) weights, resident across grid steps
    b*:    f32 (1, out) biases
    o_ref: (tile_b, OUT_PAD) bf16 logits (columns >= 10 are zero)
    """
    x = x_ref[...].astype(jnp.bfloat16)

    h1 = jnp.dot(x, w1_ref[...], preferred_element_type=jnp.float32)
    h1 = jnp.maximum(h1 + b1_ref[...], 0.0).astype(jnp.bfloat16)   # ReLU in f32

    h2 = jnp.dot(h1, w2_ref[...], preferred_element_type=jnp.float32)
    h2 = jnp.maximum(h2 + b2_ref[...], 0.0).astype(jnp.bfloat16)

    logits = jnp.dot(h2, w3_ref[...], preferred_element_type=jnp.float32)
    o_ref[...] = (logits + b3_ref[...]).astype(o_ref.dtype)


@jax.jit
def neural_network_forward(x_nchw, params):
    """Flatten NCHW input and run the fused Pallas MLP. `params` must come from
    `prepare_params` (bf16 weights, f32 biases, layer-3 padded to 128 lanes)."""
    w1, b1, w2, b2, w3p, b3p = params
    B = x_nchw.shape[0]

    # nn.Flatten(): keep batch dim, flatten the rest (row-major == torch).
    x = x_nchw.reshape(B, -1)
    assert x.shape[1] == IN_DIM
    if x.dtype != jnp.bfloat16:
        # Prefer feeding bf16 from upstream so this fuses with the producer.
        x = x.astype(jnp.bfloat16)

    tile_b = _choose_tile_b(B)
    num_tiles = pl.cdiv(B, tile_b)   # ragged last block handled by Pallas

    n_weight_elems = IN_DIM * HID + HID * HID + HID * OUT_PAD
    cost = pl.CostEstimate(
        flops=2 * B * n_weight_elems,
        transcendentals=0,
        bytes_accessed=(B * IN_DIM * 2            # x (bf16)
                        + n_weight_elems * 2      # weights (bf16)
                        + (2 * HID + OUT_PAD) * 4  # biases (f32)
                        + B * OUT_PAD * 2))       # logits (bf16)

    resident = lambda shape: pl.BlockSpec(shape, lambda i: (0, 0))

    out = pl.pallas_call(
        mlp_kernel,
        out_shape=jax.ShapeDtypeStruct((B, OUT_PAD), jnp.bfloat16),
        grid=(num_tiles,),
        in_specs=[
            pl.BlockSpec((tile_b, IN_DIM), lambda i: (i, 0)),   # x tile (pipelined)
            resident((IN_DIM, HID)),                            # w1 (bf16, resident)
            resident((1, HID)),                                 # b1
            resident((HID, HID)),                               # w2
            resident((1, HID)),                                 # b2
            resident((HID, OUT_PAD)),                           # w3 (padded)
            resident((1, OUT_PAD)),                             # b3 (padded)
        ],
        out_specs=pl.BlockSpec((tile_b, OUT_PAD), lambda i: (i, 0)),
        compiler_params=pltpu.CompilerParams(
            dimension_semantics=("parallel",),      # megacore split on v7x
            vmem_limit_bytes=40 * 1024 * 1024),
        cost_estimate=cost,
    )(x, w1, b1, w2, b2, w3p, b3p)

    # Drop the padded lanes; return f32 logits like the torch module.
    return out[:, :OUT_DIM].astype(jnp.float32)


def init_params(key):
    """f32 parameters matching nn.Linear defaults, stored (in, out)."""
    k1, k2, k3, k4, k5, k6 = jax.random.split(key, 6)

    def linear_init(kw, kb, fan_in, fan_out):
        bound = 1.0 / jnp.sqrt(jnp.float32(fan_in))
        w = jax.random.uniform(kw, (fan_in, fan_out), jnp.float32, -bound, bound)
        b = jax.random.uniform(kb, (1, fan_out), jnp.float32, -bound, bound)
        return w, b

    w1, b1 = linear_init(k1, k2, IN_DIM, HID)
    w2, b2 = linear_init(k3, k4, HID, HID)
    w3, b3 = linear_init(k5, k6, HID, OUT_DIM)
    return (w1, b1, w2, b2, w3, b3)


def prepare_params(params):
    """One-time layout/dtype pass: bf16 weights, f32 biases, pad layer 3 to
    128 output lanes (zero columns) for lane-dense MXU/store paths."""
    w1, b1, w2, b2, w3, b3 = params
    w3p = jnp.zeros((HID, OUT_PAD), jnp.float32).at[:, :OUT_DIM].set(w3)
    b3p = jnp.zeros((1, OUT_PAD), jnp.float32).at[:, :OUT_DIM].set(b3)
    return (w1.astype(jnp.bfloat16), b1.astype(jnp.float32),
            w2.astype(jnp.bfloat16), b2.astype(jnp.float32),
            w3p.astype(jnp.bfloat16), b3p.astype(jnp.float32))


def reference_forward(x_nchw, params):
    """Pure-JAX f32 reference (matches the PyTorch module)."""
    w1, b1, w2, b2, w3, b3 = params
    x = x_nchw.reshape(x_nchw.shape[0], -1).astype(jnp.float32)
    h1 = jnp.maximum(x @ w1 + b1, 0.0)
    h2 = jnp.maximum(h1 @ w2 + b2, 0.0)
    return h2 @ w3 + b3


if __name__ == "__main__":
    key = jax.random.PRNGKey(0)
    kp, kx1, kx2 = jax.random.split(key, 3)

    params_f32 = init_params(kp)
    params = prepare_params(params_f32)

    # Small MNIST-like batch: NCHW (B=8, C=1, H=28, W=28), bf16 input stream
    # (cast at the producer, so the kernel sees bf16 directly).
    x_small = jax.random.normal(kx1, (8, 1, 28, 28), jnp.float32).astype(jnp.bfloat16)
    logits_small = jax.block_until_ready(neural_network_forward(x_small, params))
    ref_small = reference_forward(x_small, params_f32)
    assert logits_small.shape == (8, OUT_DIM), logits_small.shape
    assert logits_small.dtype == jnp.float32
    # bf16 weights/activations/IO with f32 accumulation -> loosened tolerance.
    assert jnp.allclose(logits_small, ref_small, atol=7.5e-2, rtol=5e-2), \
        "mismatch vs f32 reference (small batch)"

    # Larger, non-tile-aligned batch exercises the ragged batch grid
    # (B=300 -> 2 tiles of 152 rows, 4 out-of-range rows clipped by Pallas).
    x_big = jax.random.normal(kx2, (300, 1, 28, 28), jnp.float32).astype(jnp.bfloat16)
    logits_big = jax.block_until_ready(neural_network_forward(x_big, params))
    ref_big = reference_forward(x_big, params_f32)
    assert logits_big.shape == (300, OUT_DIM), logits_big.shape
    assert jnp.allclose(logits_big, ref_big, atol=7.5e-2, rtol=5e-2), \
        "mismatch vs f32 reference (ragged tiled batch)"

    print("KERNEL_OK")
</pallas_src>

<mosaic_0001>
module attributes {stable_mosaic.version = 11 : i64} {
  func.func @mlp_kernel(%arg0: i32, %arg1: memref<8x784xbf16, #tpu.memory_space<vmem>>, %arg2: memref<784x512xbf16, #tpu.memory_space<vmem>>, %arg3: memref<1x512xf32, #tpu.memory_space<vmem>>, %arg4: memref<512x512xbf16, #tpu.memory_space<vmem>>, %arg5: memref<1x512xf32, #tpu.memory_space<vmem>>, %arg6: memref<512x128xbf16, #tpu.memory_space<vmem>>, %arg7: memref<1x128xf32, #tpu.memory_space<vmem>>, %arg8: memref<8x128xbf16, #tpu.memory_space<vmem>>) attributes {dimension_semantics = [#tpu.dimension_semantics<parallel>], iteration_bounds = array<i64: 1>, scalar_prefetch = 0 : i64, scratch_operands = 0 : i64, tpu.core_type = #tpu.core_type<tc>, window_params = [{transform_indices = @transform_0, window_bounds = array<i64: 8, 784>}, {pipeline_mode = #tpu.pipeline_mode<synchronous>, transform_indices = @transform_1, window_bounds = array<i64: 784, 512>}, {pipeline_mode = #tpu.pipeline_mode<synchronous>, transform_indices = @transform_2, window_bounds = array<i64: 1, 512>}, {pipeline_mode = #tpu.pipeline_mode<synchronous>, transform_indices = @transform_3, window_bounds = array<i64: 512, 512>}, {pipeline_mode = #tpu.pipeline_mode<synchronous>, transform_indices = @transform_4, window_bounds = array<i64: 1, 512>}, {pipeline_mode = #tpu.pipeline_mode<synchronous>, transform_indices = @transform_5, window_bounds = array<i64: 512, 128>}, {pipeline_mode = #tpu.pipeline_mode<synchronous>, transform_indices = @transform_6, window_bounds = array<i64: 1, 128>}, {transform_indices = @transform_7, window_bounds = array<i64: 8, 128>}]} {
    %c0 = arith.constant 0 : index
    %c0_0 = arith.constant 0 : index
    %0 = vector.load %arg1[%c0, %c0_0] : memref<8x784xbf16, #tpu.memory_space<vmem>>, vector<8x784xbf16>
    %c0_1 = arith.constant 0 : index
    %c0_2 = arith.constant 0 : index
    %1 = vector.load %arg2[%c0_1, %c0_2] : memref<784x512xbf16, #tpu.memory_space<vmem>>, vector<784x512xbf16>
    %cst = arith.constant dense<0.000000e+00> : vector<8x512xf32>
    %2 = tpu.matmul %0, %1, %cst {dimension_numbers = #tpu.dot_dimension_numbers<[1], [0], [0], [1], [0, 0, 1, 1], [], []>} : vector<8x784xbf16>, vector<784x512xbf16>, vector<8x512xf32> -> vector<8x512xf32>
    %c0_3 = arith.constant 0 : index
    %c0_4 = arith.constant 0 : index
    %3 = vector.load %arg3[%c0_3, %c0_4] : memref<1x512xf32, #tpu.memory_space<vmem>>, vector<1x512xf32>
    %4 = vector.broadcast %3 : vector<1x512xf32> to vector<8x512xf32>
    %5 = arith.addf %2, %4 : vector<8x512xf32>
    %cst_5 = arith.constant 0.000000e+00 : f32
    %6 = vector.broadcast %cst_5 : f32 to vector<8x512xf32>
    %7 = arith.maximumf %5, %6 : vector<8x512xf32>
    %8 = arith.truncf %7 : vector<8x512xf32> to vector<8x512xbf16>
    %c0_6 = arith.constant 0 : index
    %c0_7 = arith.constant 0 : index
    %9 = vector.load %arg4[%c0_6, %c0_7] : memref<512x512xbf16, #tpu.memory_space<vmem>>, vector<512x512xbf16>
    %cst_8 = arith.constant dense<0.000000e+00> : vector<8x512xf32>
    %10 = tpu.matmul %8, %9, %cst_8 {dimension_numbers = #tpu.dot_dimension_numbers<[1], [0], [0], [1], [0, 0, 1, 1], [], []>} : vector<8x512xbf16>, vector<512x512xbf16>, vector<8x512xf32> -> vector<8x512xf32>
    %c0_9 = arith.constant 0 : index
    %c0_10 = arith.constant 0 : index
    %11 = vector.load %arg5[%c0_9, %c0_10] : memref<1x512xf32, #tpu.memory_space<vmem>>, vector<1x512xf32>
    %12 = vector.broadcast %11 : vector<1x512xf32> to vector<8x512xf32>
    %13 = arith.addf %10, %12 : vector<8x512xf32>
    %cst_11 = arith.constant 0.000000e+00 : f32
    %14 = vector.broadcast %cst_11 : f32 to vector<8x512xf32>
    %15 = arith.maximumf %13, %14 : vector<8x512xf32>
    %16 = arith.truncf %15 : vector<8x512xf32> to vector<8x512xbf16>
    %c0_12 = arith.constant 0 : index
    %c0_13 = arith.constant 0 : index
    %17 = vector.load %arg6[%c0_12, %c0_13] : memref<512x128xbf16, #tpu.memory_space<vmem>>, vector<512x128xbf16>
    %cst_14 = arith.constant dense<0.000000e+00> : vector<8x128xf32>
    %18 = tpu.matmul %16, %17, %cst_14 {dimension_numbers = #tpu.dot_dimension_numbers<[1], [0], [0], [1], [0, 0, 1, 1], [], []>} : vector<8x512xbf16>, vector<512x128xbf16>, vector<8x128xf32> -> vector<8x128xf32>
    %c0_15 = arith.constant 0 : index
    %c0_16 = arith.constant 0 : index
    %19 = vector.load %arg7[%c0_15, %c0_16] : memref<1x128xf32, #tpu.memory_space<vmem>>, vector<1x128xf32>
    %20 = vector.broadcast %19 : vector<1x128xf32> to vector<8x128xf32>
    %21 = arith.addf %18, %20 : vector<8x128xf32>
    %22 = arith.truncf %21 : vector<8x128xf32> to vector<8x128xbf16>
    %c0_17 = arith.constant 0 : index
    %c0_18 = arith.constant 0 : index
    %23 = vector.load %arg8[%c0_17, %c0_18] : memref<8x128xbf16, #tpu.memory_space<vmem>>, vector<8x128xbf16>
    tpu.vector_store %arg8[%c0_17, %c0_18], %22 {strides = array<i32>} : memref<8x128xbf16, #tpu.memory_space<vmem>>, vector<8x128xbf16>,
    return
  }
  func.func @transform_0(%arg0: i32) -> (i32, i32) {
    %c0_i32 = arith.constant 0 : i32
    %c0_i32_0 = arith.constant 0 : i32
    return %arg0, %c0_i32 : i32, i32
  }
  func.func @transform_1(%arg0: i32) -> (i32, i32) {
    %c0_i32 = arith.constant 0 : i32
    %c0_i32_0 = arith.constant 0 : i32
    %c0_i32_1 = arith.constant 0 : i32
    return %c0_i32, %c0_i32_0 : i32, i32
  }
  func.func @transform_2(%arg0: i32) -> (i32, i32) {
    %c0_i32 = arith.constant 0 : i32
    %c0_i32_0 = arith.constant 0 : i32
    %c0_i32_1 = arith.constant 0 : i32
    return %c0_i32, %c0_i32_0 : i32, i32
  }
  func.func @transform_3(%arg0: i32) -> (i32, i32) {
    %c0_i32 = arith.constant 0 : i32
    %c0_i32_0 = arith.constant 0 : i32
    %c0_i32_1 = arith.constant 0 : i32
    return %c0_i32, %c0_i32_0 : i32, i32
  }
  func.func @transform_4(%arg0: i32) -> (i32, i32) {
    %c0_i32 = arith.constant 0 : i32
    %c0_i32_0 = arith.constant 0 : i32
    %c0_i32_1 = arith.constant 0 : i32
    return %c0_i32, %c0_i32_0 : i32, i32
  }
  func.func @transform_5(%arg0: i32) -> (i32, i32) {
    %c0_i32 = arith.constant 0 : i32
    %c0_i32_0 = arith.constant 0 : i32
    %c0_i32_1 = arith.constant 0 : i32
    return %c0_i32, %c0_i32_0 : i32, i32
  }
  func.func @transform_6(%arg0: i32) -> (i32, i32) {
    %c0_i32 = arith.constant 0 : i32
    %c0_i32_0 = arith.constant 0 : i32
    %c0_i32_1 = arith.constant 0 : i32
    return %c0_i32, %c0_i32_0 : i32, i32
  }
  func.func @transform_7(%arg0: i32) -> (i32, i32) {
    %c0_i32 = arith.constant 0 : i32
    %c0_i32_0 = arith.constant 0 : i32
    return %arg0, %c0_i32 : i32, i32
  }
}

</mosaic_0001>

<llo_original>
// kernel: neural_network_forward.1
$region0: #{neural_network_forward.1}
  #allocation0 [shape = 'u32[]', space=smem, size = 0x4, offset = 0x4, fixed_abs, tag = 'smem constant byte address 0x4 - core index']
  #allocation1 [shape = 'u32[144,128]{1,0:T(1,128)}', space=vmem, size = 0x12000, scoped, tag = 'internal scratch']
  %s0 = inlined_call_operand.vmem [shape: bf16[8,784], index: 0, kind: input, shape index: {}]
  %s1 = inlined_call_operand.hbm [shape: bf16[784,512], index: 1, kind: input, shape index: {}]
  %s2 = inlined_call_operand.vmem [shape: f32[1,512], index: 2, kind: input, shape index: {}]
  %s3 = inlined_call_operand.hbm [shape: bf16[512,512], index: 3, kind: input, shape index: {}]
  %s4 = inlined_call_operand.vmem [shape: f32[1,512], index: 4, kind: input, shape index: {}]
  %s5 = inlined_call_operand.vmem [shape: bf16[512,128], index: 5, kind: input, shape index: {}]
  %s6 = inlined_call_operand.vmem [shape: f32[1,128], index: 6, kind: input, shape index: {}]
  %s7 = inlined_call_operand.vmem [shape: bf16[8,128], index: 7, kind: output, shape index: {}]
  %s8 = sld [smem:[#allocation0]]
  $region46: #{neural_network_forward.1} parent=0
    _
  %s10 = ssub.s32 1, %s8
  %s11 = scalar_select 0, %s10, %s8
  $region1: #{neural_network_forward.1} parent=0
    #allocation2 [shape = 'u8[802816]{0}', space=vmem, size = 0xc4000, scoped, tag = 'input window, operand 1, single buffered']
    #allocation3 [shape = 's32[1]{0}', space=sflag, size = 0x4, scoped, tag = 'scoped memory for neural_network_forward.1']
    #allocation4 [shape = 'u8[524288]{0}', space=vmem, size = 0x80000, scoped, tag = 'input window, operand 3, single buffered']
    #allocation5 [shape = 's32[1]{0}', space=sflag, size = 0x4, scoped, tag = 'scoped memory for neural_network_forward.1']
    %12 = vsyncpa [#allocation3], 0
    %13 = vsyncpa [#allocation5], 0
    // Predicated region
    $region2: #{neural_network_forward.1} parent=1 // pred_check
      _
    $region3: #{neural_network_forward.1} parent=1 // pred_check_branch
      %15 = sbr.rel (0) target = $region5
    $region4: #{neural_network_forward.1} parent=1 // pred_region
      _
    $region5: #{neural_network_forward.1} parent=1 // pred_fallthru
      _
    // Predicated region
    $region6: #{neural_network_forward.1} parent=1 // pred_check
      _
    $region7: #{neural_network_forward.1} parent=1 // pred_check_branch
      %17 = sbr.rel (0) target = $region9
    $region8: #{neural_network_forward.1} parent=1 // pred_region
      %s19 = ssub.s32 25088, 25088
      %20 = vsyncadd [#allocation3], %s19
      %s21 = sshll.u32 [#allocation2], 4
      %s22 = int_to_ptr.vmem [resolvable:$true] %s21
      %27 = dma.hbm_to_vmem [thread:$0]  %s1, 25088, %s22, [#allocation3], 256, 256, 16
    $region9: #{neural_network_forward.1} parent=1 // pred_fallthru
      _
    // Predicated region
    $region10: #{neural_network_forward.1} parent=1 // pred_check
      _
    $region11: #{neural_network_forward.1} parent=1 // pred_check_branch
      %29 = sbr.rel (0) target = $region13
    $region12: #{neural_network_forward.1} parent=1 // pred_region
      _
    $region13: #{neural_network_forward.1} parent=1 // pred_fallthru
      _
    // Predicated region
    $region14: #{neural_network_forward.1} parent=1 // pred_check
      _
    $region15: #{neural_network_forward.1} parent=1 // pred_check_branch
      %31 = sbr.rel (0) target = $region17
    $region16: #{neural_network_forward.1} parent=1 // pred_region
      %s33 = ssub.s32 16384, 16384
      %34 = vsyncadd [#allocation5], %s33
      %s35 = sshll.u32 [#allocation4], 4
      %s36 = int_to_ptr.vmem [resolvable:$true] %s35
      %41 = dma.hbm_to_vmem [thread:$0]  %s3, 16384, %s36, [#allocation5], 256, 256, 16
    $region17: #{neural_network_forward.1} parent=1 // pred_fallthru
      _
    // Predicated region
    $region18: #{neural_network_forward.1} parent=1 // pred_check
      _
    $region19: #{neural_network_forward.1} parent=1 // pred_check_branch
      %43 = sbr.rel (0) target = $region21
    $region20: #{neural_network_forward.1} parent=1 // pred_region
      _
    $region21: #{neural_network_forward.1} parent=1 // pred_fallthru
      _
    // Predicated region
    $region22: #{neural_network_forward.1} parent=1 // pred_check
      _
    $region23: #{neural_network_forward.1} parent=1 // pred_check_branch
      %45 = sbr.rel (0) target = $region25
    $region24: #{neural_network_forward.1} parent=1 // pred_region
      _
    $region25: #{neural_network_forward.1} parent=1 // pred_fallthru
      _
    // Predicated region
    $region26: #{neural_network_forward.1} parent=1 // pred_check
      _
    $region27: #{neural_network_forward.1} parent=1 // pred_check_branch
      %47 = sbr.rel (0) target = $region29
    $region28: #{neural_network_forward.1} parent=1 // pred_region
      _
    $region29: #{neural_network_forward.1} parent=1 // pred_fallthru
      _
    // Predicated region
    $region30: #{neural_network_forward.1} parent=1 // pred_check
      _
    $region31: #{neural_network_forward.1} parent=1 // pred_check_branch
      %49 = sbr.rel (0) target = $region33
    $region32: #{neural_network_forward.1} parent=1 // pred_region
      %50 = dma.done [#allocation3], 25088
    $region33: #{neural_network_forward.1} parent=1 // pred_fallthru
      _
    // Predicated region
    $region34: #{neural_network_forward.1} parent=1 // pred_check
      _
    $region35: #{neural_network_forward.1} parent=1 // pred_check_branch
      %52 = sbr.rel (0) target = $region37
    $region36: #{neural_network_forward.1} parent=1 // pred_region
      %53 = dma.done [#allocation5], 16384
    $region37: #{neural_network_forward.1} parent=1 // pred_fallthru
      _
    %v55 = vld [vmem:[%s0] sm:$0xff]
    %v56 = vld [vmem:[%s0 + $0x8] sm:$0xff]
    %v57 = vld [vmem:[%s0 + $0x10] sm:$0xff]
    %v58 = vld [vmem:[%s0 + $0x18] sm:$0xf]
    %v59 = vld [vmem:[#allocation2] sm:$0xff]
    %v60 = vld [vmem:[#allocation2 + $0x8] sm:$0xff]
    %v61 = vld [vmem:[#allocation2 + $0x10] sm:$0xff]
    %v62 = vld [vmem:[#allocation2 + $0x18] sm:$0xff]
    %v63 = vld [vmem:[#allocation2 + $0x20] sm:$0xff]
    %v64 = vld [vmem:[#allocation2 + $0x28] sm:$0xff]
    %v65 = vld [vmem:[#allocation2 + $0x30] sm:$0xff]
    %v66 = vld [vmem:[#allocation2 + $0x38] sm:$0xff]
    %v67 = vld [vmem:[#allocation2 + $0x40] sm:$0xff]
    %v68 = vld [vmem:[#allocation2 + $0x48] sm:$0xff]
    %v69 = vld [vmem:[#allocation2 + $0x50] sm:$0xff]
    %v70 = vld [vmem:[#allocation2 + $0x58] sm:$0xff]
    %v71 = vld [vmem:[#allocation2 + $0x60] sm:$0xff]
    %v72 = vld [vmem:[#allocation2 + $0x68] sm:$0xff]
    %v73 = vld [vmem:[#allocation2 + $0x70] sm:$0xff]
    %v74 = vld [vmem:[#allocation2 + $0x78] sm:$0xff]
    %v75 = vld [vmem:[#allocation2 + $0x80] sm:$0xff]
    %v76 = vld [vmem:[#allocation2 + $0x88] sm:$0xff]
    %v77 = vld [vmem:[#allocation2 + $0x90] sm:$0xff]
    %v78 = vld [vmem:[#allocation2 + $0x98] sm:$0xff]
    %v79 = vld [vmem:[#allocation2 + $0xa0] sm:$0xff]
    %v80 = vld [vmem:[#allocation2 + $0xa8] sm:$0xff]
    %v81 = vld [vmem:[#allocation2 + $0xb0] sm:$0xff]
    %v82 = vld [vmem:[#allocation2 + $0xb8] sm:$0xff]
    %v83 = vld [vmem:[#allocation2 + $0xc0] sm:$0xff]
    %v84 = vld [vmem:[#allocation2 + $0xc8] sm:$0xff]
    %v85 = vld [vmem:[#allocation2 + $0xd0] sm:$0xff]
    %v86 = vld [vmem:[#allocation2 + $0xd8] sm:$0xff]
    %v87 = vld [vmem:[#allocation2 + $0xe0] sm:$0xff]
    %v88 = vld [vmem:[#allocation2 + $0xe8] sm:$0xff]
    %v89 = vld [vmem:[#allocation2 + $0xf0] sm:$0xff]
    %v90 = vld [vmem:[#allocation2 + $0xf8] sm:$0xff]
    %v91 = vld [vmem:[#allocation2 + $0x100] sm:$0xff]
    %v92 = vld [vmem:[#allocation2 + $0x108] sm:$0xff]
    %v93 = vld [vmem:[#allocation2 + $0x110] sm:$0xff]
    %v94 = vld [vmem:[#allocation2 + $0x118] sm:$0xff]
    %v95 = vld [vmem:[#allocation2 + $0x120] sm:$0xff]
    %v96 = vld [vmem:[#allocation2 + $0x128] sm:$0xff]
    %v97 = vld [vmem:[#allocation2 + $0x130] sm:$0xff]
    %v98 = vld [vmem:[#allocation2 + $0x138] sm:$0xff]
    %v99 = vld [vmem:[#allocation2 + $0x140] sm:$0xff]
    %v100 = vld [vmem:[#allocation2 + $0x148] sm:$0xff]
    %v101 = vld [vmem:[#allocation2 + $0x150] sm:$0xff]
    %v102 = vld [vmem:[#allocation2 + $0x158] sm:$0xff]
    %v103 = vld [vmem:[#allocation2 + $0x160] sm:$0xff]
    %v104 = vld [vmem:[#allocation2 + $0x168] sm:$0xff]
    %v105 = vld [vmem:[#allocation2 + $0x170] sm:$0xff]
    %v106 = vld [vmem:[#allocation2 + $0x178] sm:$0xff]
    %v107 = vld [vmem:[#allocation2 + $0x180] sm:$0xff]
    %v108 = vld [vmem:[#allocation2 + $0x188] sm:$0xff]
    %v109 = vld [vmem:[#allocation2 + $0x190] sm:$0xff]
    %v110 = vld [vmem:[#allocation2 + $0x198] sm:$0xff]
    %v111 = vld [vmem:[#allocation2 + $0x1a0] sm:$0xff]
    %v112 = vld [vmem:[#allocation2 + $0x1a8] sm:$0xff]
    %v113 = vld [vmem:[#allocation2 + $0x1b0] sm:$0xff]
    %v114 = vld [vmem:[#allocation2 + $0x1b8] sm:$0xff]
    %v115 = vld [vmem:[#allocation2 + $0x1c0] sm:$0xff]
    %v116 = vld [vmem:[#allocation2 + $0x1c8] sm:$0xff]
    %v117 = vld [vmem:[#allocation2 + $0x1d0] sm:$0xff]
    %v118 = vld [vmem:[#allocation2 + $0x1d8] sm:$0xff]
    %v119 = vld [vmem:[#allocation2 + $0x1e0] sm:$0xff]
    %v120 = vld [vmem:[#allocation2 + $0x1e8] sm:$0xff]
    %v121 = vld [vmem:[#allocation2 + $0x1f0] sm:$0xff]
    %v122 = vld [vmem:[#allocation2 + $0x1f8] sm:$0xff]
    %v123 = vld [vmem:[#allocation2 + $0x200] sm:$0xff]
    %v124 = vld [vmem:[#allocation2 + $0x208] sm:$0xff]
    %v125 = vld [vmem:[#allocation2 + $0x210] sm:$0xff]
    %v126 = vld [vmem:[#allocation2 + $0x218] sm:$0xff]
    %v127 = vld [vmem:[#allocation2 + $0x220] sm:$0xff]
    %v128 = vld [vmem:[#allocation2 + $0x228] sm:$0xff]
    %v129 = vld [vmem:[#allocation2 + $0x230] sm:$0xff]
    %v130 = vld [vmem:[#allocation2 + $0x238] sm:$0xff]
    %v131 = vld [vmem:[#allocation2 + $0x240] sm:$0xff]
    %v132 = vld [vmem:[#allocation2 + $0x248] sm:$0xff]
    %v133 = vld [vmem:[#allocation2 + $0x250] sm:$0xff]
    %v134 = vld [vmem:[#allocation2 + $0x258] sm:$0xff]
    %v135 = vld [vmem:[#allocation2 + $0x260] sm:$0xff]
    %v136 = vld [vmem:[#allocation2 + $0x268] sm:$0xff]
    %v137 = vld [vmem:[#allocation2 + $0x270] sm:$0xff]
    %v138 = vld [vmem:[#allocation2 + $0x278] sm:$0xff]
    %v139 = vld [vmem:[#allocation2 + $0x280] sm:$0xff]
    %v140 = vld [vmem:[#allocation2 + $0x288] sm:$0xff]
    %v141 = vld [vmem:[#allocation2 + $0x290] sm:$0xff]
    %v142 = vld [vmem:[#allocation2 + $0x298] sm:$0xff]
    %v143 = vld [vmem:[#allocation2 + $0x2a0] sm:$0xff]
    %v144 = vld [vmem:[#allocation2 + $0x2a8] sm:$0xff]
    %v145 = vld [vmem:[#allocation2 + $0x2b0] sm:$0xff]
    %v146 = vld [vmem:[#allocation2 + $0x2b8] sm:$0xff]
    %v147 = vld [vmem:[#allocation2 + $0x2c0] sm:$0xff]
    %v148 = vld [vmem:[#allocation2 + $0x2c8] sm:$0xff]
    %v149 = vld [vmem:[#allocation2 + $0x2d0] sm:$0xff]
    %v150 = vld [vmem:[#allocation2 + $0x2d8] sm:$0xff]
    %v151 = vld [vmem:[#allocation2 + $0x2e0] sm:$0xff]
    %v152 = vld [vmem:[#allocation2 + $0x2e8] sm:$0xff]
    %v153 = vld [vmem:[#allocation2 + $0x2f0] sm:$0xff]
    %v154 = vld [vmem:[#allocation2 + $0x2f8] sm:$0xff]
    %v155 = vld [vmem:[#allocation2 + $0x300] sm:$0xff]
    %v156 = vld [vmem:[#allocation2 + $0x308] sm:$0xff]
    %v157 = vld [vmem:[#allocation2 + $0x310] sm:$0xff]
    %v158 = vld [vmem:[#allocation2 + $0x318] sm:$0xff]
    %v159 = vld [vmem:[#allocation2 + $0x320] sm:$0xff]
    %v160 = vld [vmem:[#allocation2 + $0x328] sm:$0xff]
    %v161 = vld [vmem:[#allocation2 + $0x330] sm:$0xff]
    %v162 = vld [vmem:[#allocation2 + $0x338] sm:$0xff]
    %v163 = vld [vmem:[#allocation2 + $0x340] sm:$0xff]
    %v164 = vld [vmem:[#allocation2 + $0x348] sm:$0xff]
    %v165 = vld [vmem:[#allocation2 + $0x350] sm:$0xff]
    %v166 = vld [vmem:[#allocation2 + $0x358] sm:$0xff]
    %v167 = vld [vmem:[#allocation2 + $0x360] sm:$0xff]
    %v168 = vld [vmem:[#allocation2 + $0x368] sm:$0xff]
    %v169 = vld [vmem:[#allocation2 + $0x370] sm:$0xff]
    %v170 = vld [vmem:[#allocation2 + $0x378] sm:$0xff]
    %v171 = vld [vmem:[#allocation2 + $0x380] sm:$0xff]
    %v172 = vld [vmem:[#allocation2 + $0x388] sm:$0xff]
    %v173 = vld [vmem:[#allocation2 + $0x390] sm:$0xff]
    %v174 = vld [vmem:[#allocation2 + $0x398] sm:$0xff]
    %v175 = vld [vmem:[#allocation2 + $0x3a0] sm:$0xff]
    %v176 = vld [vmem:[#allocation2 + $0x3a8] sm:$0xff]
    %v177 = vld [vmem:[#allocation2 + $0x3b0] sm:$0xff]
    %v178 = vld [vmem:[#allocation2 + $0x3b8] sm:$0xff]
    %v179 = vld [vmem:[#allocation2 + $0x3c0] sm:$0xff]
    %v180 = vld [vmem:[#allocation2 + $0x3c8] sm:$0xff]
    %v181 = vld [vmem:[#allocation2 + $0x3d0] sm:$0xff]
    %v182 = vld [vmem:[#allocation2 + $0x3d8] sm:$0xff]
    %v183 = vld [vmem:[#allocation2 + $0x3e0] sm:$0xff]
    %v184 = vld [vmem:[#allocation2 + $0x3e8] sm:$0xff]
    %v185 = vld [vmem:[#allocation2 + $0x3f0] sm:$0xff]
    %v186 = vld [vmem:[#allocation2 + $0x3f8] sm:$0xff]
    %v187 = vld [vmem:[#allocation2 + $0x400] sm:$0xff]
    %v188 = vld [vmem:[#allocation2 + $0x408] sm:$0xff]
    %v189 = vld [vmem:[#allocation2 + $0x410] sm:$0xff]
    %v190 = vld [vmem:[#allocation2 + $0x418] sm:$0xff]
    %v191 = vld [vmem:[#allocation2 + $0x420] sm:$0xff]
    %v192 = vld [vmem:[#allocation2 + $0x428] sm:$0xff]
    %v193 = vld [vmem:[#allocation2 + $0x430] sm:$0xff]
    %v194 = vld [vmem:[#allocation2 + $0x438] sm:$0xff]
    %v195 = vld [vmem:[#allocation2 + $0x440] sm:$0xff]
    %v196 = vld [vmem:[#allocation2 + $0x448] sm:$0xff]
    %v197 = vld [vmem:[#allocation2 + $0x450] sm:$0xff]
    %v198 = vld [vmem:[#allocation2 + $0x458] sm:$0xff]
    %v199 = vld [vmem:[#allocation2 + $0x460] sm:$0xff]
    %v200 = vld [vmem:[#allocation2 + $0x468] sm:$0xff]
    %v201 = vld [vmem:[#allocation2 + $0x470] sm:$0xff]
    %v202 = vld [vmem:[#allocation2 + $0x478] sm:$0xff]
    %v203 = vld [vmem:[#allocation2 + $0x480] sm:$0xff]
    %v204 = vld [vmem:[#allocation2 + $0x488] sm:$0xff]
    %v205 = vld [vmem:[#allocation2 + $0x490] sm:$0xff]
    %v206 = vld [vmem:[#allocation2 + $0x498] sm:$0xff]
    %v207 = vld [vmem:[#allocation2 + $0x4a0] sm:$0xff]
    %v208 = vld [vmem:[#allocation2 + $0x4a8] sm:$0xff]
    %v209 = vld [vmem:[#allocation2 + $0x4b0] sm:$0xff]
    %v210 = vld [vmem:[#allocation2 + $0x4b8] sm:$0xff]
    %v211 = vld [vmem:[#allocation2 + $0x4c0] sm:$0xff]
    %v212 = vld [vmem:[#allocation2 + $0x4c8] sm:$0xff]
    %v213 = vld [vmem:[#allocation2 + $0x4d0] sm:$0xff]
    %v214 = vld [vmem:[#allocation2 + $0x4d8] sm:$0xff]
    %v215 = vld [vmem:[#allocation2 + $0x4e0] sm:$0xff]
    %v216 = vld [vmem:[#allocation2 + $0x4e8] sm:$0xff]
    %v217 = vld [vmem:[#allocation2 + $0x4f0] sm:$0xff]
    %v218 = vld [vmem:[#allocation2 + $0x4f8] sm:$0xff]
    %v219 = vld [vmem:[#allocation2 + $0x500] sm:$0xff]
    %v220 = vld [vmem:[#allocation2 + $0x508] sm:$0xff]
    %v221 = vld [vmem:[#allocation2 + $0x510] sm:$0xff]
    %v222 = vld [vmem:[#allocation2 + $0x518] sm:$0xff]
    %v223 = vld [vmem:[#allocation2 + $0x520] sm:$0xff]
    %v224 = vld [vmem:[#allocation2 + $0x528] sm:$0xff]
    %v225 = vld [vmem:[#allocation2 + $0x530] sm:$0xff]
    %v226 = vld [vmem:[#allocation2 + $0x538] sm:$0xff]
    %v227 = vld [vmem:[#allocation2 + $0x540] sm:$0xff]
    %v228 = vld [vmem:[#allocation2 + $0x548] sm:$0xff]
    %v229 = vld [vmem:[#allocation2 + $0x550] sm:$0xff]
    %v230 = vld [vmem:[#allocation2 + $0x558] sm:$0xff]
    %v231 = vld [vmem:[#allocation2 + $0x560] sm:$0xff]
    %v232 = vld [vmem:[#allocation2 + $0x568] sm:$0xff]
    %v233 = vld [vmem:[#allocation2 + $0x570] sm:$0xff]
    %v234 = vld [vmem:[#allocation2 + $0x578] sm:$0xff]
    %v235 = vld [vmem:[#allocation2 + $0x580] sm:$0xff]
    %v236 = vld [vmem:[#allocation2 + $0x588] sm:$0xff]
    %v237 = vld [vmem:[#allocation2 + $0x590] sm:$0xff]
    %v238 = vld [vmem:[#allocation2 + $0x598] sm:$0xff]
    %v239 = vld [vmem:[#allocation2 + $0x5a0] sm:$0xff]
    %v240 = vld [vmem:[#allocation2 + $0x5a8] sm:$0xff]
    %v241 = vld [vmem:[#allocation2 + $0x5b0] sm:$0xff]
    %v242 = vld [vmem:[#allocation2 + $0x5b8] sm:$0xff]
    %v243 = vld [vmem:[#allocation2 + $0x5c0] sm:$0xff]
    %v244 = vld [vmem:[#allocation2 + $0x5c8] sm:$0xff]
    %v245 = vld [vmem:[#allocation2 + $0x5d0] sm:$0xff]
    %v246 = vld [vmem:[#allocation2 + $0x5d8] sm:$0xff]
    %v247 = vld [vmem:[#allocation2 + $0x5e0] sm:$0xff]
    %v248 = vld [vmem:[#allocation2 + $0x5e8] sm:$0xff]
    %v249 = vld [vmem:[#allocation2 + $0x5f0] sm:$0xff]
    %v250 = vld [vmem:[#allocation2 + $0x5f8] sm:$0xff]
    %v251 = vld [vmem:[#allocation2 + $0x600] sm:$0xff]
    %v252 = vld [vmem:[#allocation2 + $0x608] sm:$0xff]
    %v253 = vld [vmem:[#allocation2 + $0x610] sm:$0xff]
    %v254 = vld [vmem:[#allocation2 + $0x618] sm:$0xff]
    %v255 = vld [vmem:[%s2] sm:$0xf]
    %v257 = vlaneseq
    %v258 = vshrl.u32 %v257, 7
    %v259 = vsub.s32 0, %v258
    %v260 = vrot.slane %v255, %v259
    %v261 = vlaneseq
    %v262 = vshrl.u32 %v261, 7
    %v263 = vsub.s32 1, %v262
    %v264 = vrot.slane %v255, %v263
    %v265 = vlaneseq
    %v266 = vshrl.u32 %v265, 7
    %v267 = vsub.s32 2, %v266
    %v268 = vrot.slane %v255, %v267
    %v269 = vlaneseq
    %v270 = vshrl.u32 %v269, 7
    %v271 = vsub.s32 3, %v270
    %v272 = vrot.slane %v255, %v271
    %v281 = vunpack.c.l.b16 %v55
    %v282 = vunpack.c.h.b16 %v55
    %v283 = vunpack.c.l.b16 %v56
    %v284 = vunpack.c.h.b16 %v56
    %v285 = vunpack.c.l.b16 %v57
    %v286 = vunpack.c.h.b16 %v57
    %v287 = vunpack.c.l.b16 %v58
    %v288 = vpack.c.b16 %v281, %v281
    %v289 = vpack.c.b16 %v282, %v282
    %v290 = vpack.c.b16 %v283, %v283
    %v291 = vpack.c.b16 %v284, %v284
    %v292 = vpack.c.b16 %v285, %v285
    %v293 = vpack.c.b16 %v286, %v286
    %v294 = vpack.c.b16 %v287, %v287
    %v497 = vunpack.c.l.b16 %v59
    %v498 = vunpack.c.h.b16 %v59
    %v499 = vunpack.c.l.b16 %v60
    %v500 = vunpack.c.h.b16 %v60
    %v501 = vunpack.c.l.b16 %v61
    %v502 = vunpack.c.h.b16 %v61
    %v503 = vunpack.c.l.b16 %v62
    %v504 = vunpack.c.h.b16 %v62
    %v505 = vunpack.c.l.b16 %v63
    %v506 = vunpack.c.h.b16 %v63
    %v507 = vunpack.c.l.b16 %v64
    %v508 = vunpack.c.h.b16 %v64
    %v509 = vunpack.c.l.b16 %v65
    %v510 = vunpack.c.h.b16 %v65
    %v511 = vunpack.c.l.b16 %v66
    %v512 = vunpack.c.h.b16 %v66
    %v513 = vunpack.c.l.b16 %v67
    %v514 = vunpack.c.h.b16 %v67
    %v515 = vunpack.c.l.b16 %v68
    %v516 = vunpack.c.h.b16 %v68
    %v517 = vunpack.c.l.b16 %v69
    %v518 = vunpack.c.h.b16 %v69
    %v519 = vunpack.c.l.b16 %v70
    %v520 = vunpack.c.h.b16 %v70
    %v521 = vunpack.c.l.b16 %v71
    %v522 = vunpack.c.h.b16 %v71
    %v523 = vunpack.c.l.b16 %v72
    %v524 = vunpack.c.h.b16 %v72
    %v525 = vunpack.c.l.b16 %v73
    %v526 = vunpack.c.h.b16 %v73
    %v527 = vunpack.c.l.b16 %v74
    %v528 = vunpack.c.h.b16 %v74
    %v529 = vunpack.c.l.b16 %v75
    %v530 = vunpack.c.h.b16 %v75
    %v531 = vunpack.c.l.b16 %v76
    %v532 = vunpack.c.h.b16 %v76
    %v533 = vunpack.c.l.b16 %v77
    %v534 = vunpack.c.h.b16 %v77
    %v535 = vunpack.c.l.b16 %v78
    %v536 = vunpack.c.h.b16 %v78
    %v537 = vunpack.c.l.b16 %v79
    %v538 = vunpack.c.h.b16 %v79
    %v539 = vunpack.c.l.b16 %v80
    %v540 = vunpack.c.h.b16 %v80
    %v541 = vunpack.c.l.b16 %v81
    %v542 = vunpack.c.h.b16 %v81
    %v543 = vunpack.c.l.b16 %v82
    %v544 = vunpack.c.h.b16 %v82
    %v545 = vunpack.c.l.b16 %v83
    %v546 = vunpack.c.h.b16 %v83
    %v547 = vunpack.c.l.b16 %v84
    %v548 = vunpack.c.h.b16 %v84
    %v549 = vunpack.c.l.b16 %v85
    %v550 = vunpack.c.h.b16 %v85
    %v551 = vunpack.c.l.b16 %v86
    %v552 = vunpack.c.h.b16 %v86
    %v553 = vunpack.c.l.b16 %v87
    %v554 = vunpack.c.h.b16 %v87
    %v555 = vunpack.c.l.b16 %v88
    %v556 = vunpack.c.h.b16 %v88
    %v557 = vunpack.c.l.b16 %v89
    %v558 = vunpack.c.h.b16 %v89
    %v559 = vunpack.c.l.b16 %v90
    %v560 = vunpack.c.h.b16 %v90
    %v561 = vunpack.c.l.b16 %v91
    %v562 = vunpack.c.h.b16 %v91
    %v563 = vunpack.c.l.b16 %v92
    %v564 = vunpack.c.h.b16 %v92
    %v565 = vunpack.c.l.b16 %v93
    %v566 = vunpack.c.h.b16 %v93
    %v567 = vunpack.c.l.b16 %v94
    %v568 = vunpack.c.h.b16 %v94
    %v569 = vunpack.c.l.b16 %v95
    %v570 = vunpack.c.h.b16 %v95
    %v571 = vunpack.c.l.b16 %v96
    %v572 = vunpack.c.h.b16 %v96
    %v573 = vunpack.c.l.b16 %v97
    %v574 = vunpack.c.h.b16 %v97
    %v575 = vunpack.c.l.b16 %v98
    %v576 = vunpack.c.h.b16 %v98
    %v577 = vunpack.c.l.b16 %v99
    %v578 = vunpack.c.h.b16 %v99
    %v579 = vunpack.c.l.b16 %v100
    %v580 = vunpack.c.h.b16 %v100
    %v581 = vunpack.c.l.b16 %v101
    %v582 = vunpack.c.h.b16 %v101
    %v583 = vunpack.c.l.b16 %v102
    %v584 = vunpack.c.h.b16 %v102
    %v585 = vunpack.c.l.b16 %v103
    %v586 = vunpack.c.h.b16 %v103
    %v587 = vunpack.c.l.b16 %v104
    %v588 = vunpack.c.h.b16 %v104
    %v589 = vunpack.c.l.b16 %v105
    %v590 = vunpack.c.h.b16 %v105
    %v591 = vunpack.c.l.b16 %v106
    %v592 = vunpack.c.h.b16 %v106
    %v593 = vunpack.c.l.b16 %v107
    %v594 = vunpack.c.h.b16 %v107
    %v595 = vunpack.c.l.b16 %v108
    %v596 = vunpack.c.h.b16 %v108
    %v597 = vunpack.c.l.b16 %v109
    %v598 = vunpack.c.h.b16 %v109
    %v599 = vunpack.c.l.b16 %v110
    %v600 = vunpack.c.h.b16 %v110
    %v601 = vunpack.c.l.b16 %v111
    %v602 = vunpack.c.h.b16 %v111
    %v603 = vunpack.c.l.b16 %v112
    %v604 = vunpack.c.h.b16 %v112
    %v605 = vunpack.c.l.b16 %v113
    %v606 = vunpack.c.h.b16 %v113
    %v607 = vunpack.c.l.b16 %v114
    %v608 = vunpack.c.h.b16 %v114
    %v609 = vunpack.c.l.b16 %v115
    %v610 = vunpack.c.h.b16 %v115
    %v611 = vunpack.c.l.b16 %v116
    %v612 = vunpack.c.h.b16 %v116
    %v613 = vunpack.c.l.b16 %v117
    %v614 = vunpack.c.h.b16 %v117
    %v615 = vunpack.c.l.b16 %v118
    %v616 = vunpack.c.h.b16 %v118
    %v617 = vunpack.c.l.b16 %v119
    %v618 = vunpack.c.h.b16 %v119
    %v619 = vunpack.c.l.b16 %v120
    %v620 = vunpack.c.h.b16 %v120
    %v621 = vunpack.c.l.b16 %v121
    %v622 = vunpack.c.h.b16 %v121
    %v623 = vunpack.c.l.b16 %v122
    %v624 = vunpack.c.h.b16 %v122
    %v625 = vunpack.c.l.b16 %v123
    %v626 = vunpack.c.h.b16 %v123
    %v627 = vunpack.c.l.b16 %v124
    %v628 = vunpack.c.h.b16 %v124
    %v629 = vunpack.c.l.b16 %v125
    %v630 = vunpack.c.h.b16 %v125
    %v631 = vunpack.c.l.b16 %v126
    %v632 = vunpack.c.h.b16 %v126
    %v633 = vunpack.c.l.b16 %v127
    %v634 = vunpack.c.h.b16 %v127
    %v635 = vunpack.c.l.b16 %v128
    %v636 = vunpack.c.h.b16 %v128
    %v637 = vunpack.c.l.b16 %v129
    %v638 = vunpack.c.h.b16 %v129
    %v639 = vunpack.c.l.b16 %v130
    %v640 = vunpack.c.h.b16 %v130
    %v641 = vunpack.c.l.b16 %v131
    %v642 = vunpack.c.h.b16 %v131
    %v643 = vunpack.c.l.b16 %v132
    %v644 = vunpack.c.h.b16 %v132
    %v645 = vunpack.c.l.b16 %v133
    %v646 = vunpack.c.h.b16 %v133
    %v647 = vunpack.c.l.b16 %v134
    %v648 = vunpack.c.h.b16 %v134
    %v649 = vunpack.c.l.b16 %v135
    %v650 = vunpack.c.h.b16 %v135
    %v651 = vunpack.c.l.b16 %v136
    %v652 = vunpack.c.h.b16 %v136
    %v653 = vunpack.c.l.b16 %v137
    %v654 = vunpack.c.h.b16 %v137
    %v655 = vunpack.c.l.b16 %v138
    %v656 = vunpack.c.h.b16 %v138
    %v657 = vunpack.c.l.b16 %v139
    %v658 = vunpack.c.h.b16 %v139
    %v659 = vunpack.c.l.b16 %v140
    %v660 = vunpack.c.h.b16 %v140
    %v661 = vunpack.c.l.b16 %v141
    %v662 = vunpack.c.h.b16 %v141
    %v663 = vunpack.c.l.b16 %v142
    %v664 = vunpack.c.h.b16 %v142
    %v665 = vunpack.c.l.b16 %v143
    %v666 = vunpack.c.h.b16 %v143
    %v667 = vunpack.c.l.b16 %v144
    %v668 = vunpack.c.h.b16 %v144
    %v669 = vunpack.c.l.b16 %v145
    %v670 = vunpack.c.h.b16 %v145
    %v671 = vunpack.c.l.b16 %v146
    %v672 = vunpack.c.h.b16 %v146
    %v673 = vunpack.c.l.b16 %v147
    %v674 = vunpack.c.h.b16 %v147
    %v675 = vunpack.c.l.b16 %v148
    %v676 = vunpack.c.h.b16 %v148
    %v677 = vunpack.c.l.b16 %v149
    %v678 = vunpack.c.h.b16 %v149
    %v679 = vunpack.c.l.b16 %v150
    %v680 = vunpack.c.h.b16 %v150
    %v681 = vunpack.c.l.b16 %v151
    %v682 = vunpack.c.h.b16 %v151
    %v683 = vunpack.c.l.b16 %v152
    %v684 = vunpack.c.h.b16 %v152
    %v685 = vunpack.c.l.b16 %v153
    %v686 = vunpack.c.h.b16 %v153
    %v687 = vunpack.c.l.b16 %v154
    %v688 = vunpack.c.h.b16 %v154
    %v689 = vunpack.c.l.b16 %v155
    %v690 = vunpack.c.h.b16 %v155
    %v691 = vunpack.c.l.b16 %v156
    %v692 = vunpack.c.h.b16 %v156
    %v693 = vunpack.c.l.b16 %v157
    %v694 = vunpack.c.h.b16 %v157
    %v695 = vunpack.c.l.b16 %v158
    %v696 = vunpack.c.h.b16 %v158
    %v697 = vunpack.c.l.b16 %v159
    %v698 = vunpack.c.h.b16 %v159
    %v699 = vunpack.c.l.b16 %v160
    %v700 = vunpack.c.h.b16 %v160
    %v701 = vunpack.c.l.b16 %v161
    %v702 = vunpack.c.h.b16 %v161
    %v703 = vunpack.c.l.b16 %v162
    %v704 = vunpack.c.h.b16 %v162
    %v705 = vunpack.c.l.b16 %v163
    %v706 = vunpack.c.h.b16 %v163
    %v707 = vunpack.c.l.b16 %v164
    %v708 = vunpack.c.h.b16 %v164
    %v709 = vunpack.c.l.b16 %v165
    %v710 = vunpack.c.h.b16 %v165
    %v711 = vunpack.c.l.b16 %v166
    %v712 = vunpack.c.h.b16 %v166
    %v713 = vunpack.c.l.b16 %v167
    %v714 = vunpack.c.h.b16 %v167
    %v715 = vunpack.c.l.b16 %v168
    %v716 = vunpack.c.h.b16 %v168
    %v717 = vunpack.c.l.b16 %v169
    %v718 = vunpack.c.h.b16 %v169
    %v719 = vunpack.c.l.b16 %v170
    %v720 = vunpack.c.h.b16 %v170
    %v721 = vunpack.c.l.b16 %v171
    %v722 = vunpack.c.h.b16 %v171
    %v723 = vunpack.c.l.b16 %v172
    %v724 = vunpack.c.h.b16 %v172
    %v725 = vunpack.c.l.b16 %v173
    %v726 = vunpack.c.h.b16 %v173
    %v727 = vunpack.c.l.b16 %v174
    %v728 = vunpack.c.h.b16 %v174
    %v729 = vunpack.c.l.b16 %v175
    %v730 = vunpack.c.h.b16 %v175
    %v731 = vunpack.c.l.b16 %v176
    %v732 = vunpack.c.h.b16 %v176
    %v733 = vunpack.c.l.b16 %v177
    %v734 = vunpack.c.h.b16 %v177
    %v735 = vunpack.c.l.b16 %v178
    %v736 = vunpack.c.h.b16 %v178
    %v737 = vunpack.c.l.b16 %v179
    %v738 = vunpack.c.h.b16 %v179
    %v739 = vunpack.c.l.b16 %v180
    %v740 = vunpack.c.h.b16 %v180
    %v741 = vunpack.c.l.b16 %v181
    %v742 = vunpack.c.h.b16 %v181
    %v743 = vunpack.c.l.b16 %v182
    %v744 = vunpack.c.h.b16 %v182
    %v745 = vunpack.c.l.b16 %v183
    %v746 = vunpack.c.h.b16 %v183
    %v747 = vunpack.c.l.b16 %v184
    %v748 = vunpack.c.h.b16 %v184
    %v749 = vunpack.c.l.b16 %v185
    %v750 = vunpack.c.h.b16 %v185
    %v751 = vunpack.c.l.b16 %v186
    %v752 = vunpack.c.h.b16 %v186
    %v753 = vunpack.c.l.b16 %v187
    %v754 = vunpack.c.h.b16 %v187
    %v755 = vunpack.c.l.b16 %v188
    %v756 = vunpack.c.h.b16 %v188
    %v757 = vunpack.c.l.b16 %v189
    %v758 = vunpack.c.h.b16 %v189
    %v759 = vunpack.c.l.b16 %v190
    %v760 = vunpack.c.h.b16 %v190
    %v761 = vunpack.c.l.b16 %v191
    %v762 = vunpack.c.h.b16 %v191
    %v763 = vunpack.c.l.b16 %v192
    %v764 = vunpack.c.h.b16 %v192
    %v765 = vunpack.c.l.b16 %v193
    %v766 = vunpack.c.h.b16 %v193
    %v767 = vunpack.c.l.b16 %v194
    %v768 = vunpack.c.h.b16 %v194
    %v769 = vunpack.c.l.b16 %v195
    %v770 = vunpack.c.h.b16 %v195
    %v771 = vunpack.c.l.b16 %v196
    %v772 = vunpack.c.h.b16 %v196
    %v773 = vunpack.c.l.b16 %v197
    %v774 = vunpack.c.h.b16 %v197
    %v775 = vunpack.c.l.b16 %v198
    %v776 = vunpack.c.h.b16 %v198
    %v777 = vunpack.c.l.b16 %v199
    %v778 = vunpack.c.h.b16 %v199
    %v779 = vunpack.c.l.b16 %v200
    %v780 = vunpack.c.h.b16 %v200
    %v781 = vunpack.c.l.b16 %v201
    %v782 = vunpack.c.h.b16 %v201
    %v783 = vunpack.c.l.b16 %v202
    %v784 = vunpack.c.h.b16 %v202
    %v785 = vunpack.c.l.b16 %v203
    %v786 = vunpack.c.h.b16 %v203
    %v787 = vunpack.c.l.b16 %v204
    %v788 = vunpack.c.h.b16 %v204
    %v789 = vunpack.c.l.b16 %v205
    %v790 = vunpack.c.h.b16 %v205
    %v791 = vunpack.c.l.b16 %v206
    %v792 = vunpack.c.h.b16 %v206
    %v793 = vunpack.c.l.b16 %v207
    %v794 = vunpack.c.h.b16 %v207
    %v795 = vunpack.c.l.b16 %v208
    %v796 = vunpack.c.h.b16 %v208
    %v797 = vunpack.c.l.b16 %v209
    %v798 = vunpack.c.h.b16 %v209
    %v799 = vunpack.c.l.b16 %v210
    %v800 = vunpack.c.h.b16 %v210
    %v801 = vunpack.c.l.b16 %v211
    %v802 = vunpack.c.h.b16 %v211
    %v803 = vunpack.c.l.b16 %v212
    %v804 = vunpack.c.h.b16 %v212
    %v805 = vunpack.c.l.b16 %v213
    %v806 = vunpack.c.h.b16 %v213
    %v807 = vunpack.c.l.b16 %v214
    %v808 = vunpack.c.h.b16 %v214
    %v809 = vunpack.c.l.b16 %v215
    %v810 = vunpack.c.h.b16 %v215
    %v811 = vunpack.c.l.b16 %v216
    %v812 = vunpack.c.h.b16 %v216
    %v813 = vunpack.c.l.b16 %v217
    %v814 = vunpack.c.h.b16 %v217
    %v815 = vunpack.c.l.b16 %v218
    %v816 = vunpack.c.h.b16 %v218
    %v817 = vunpack.c.l.b16 %v219
    %v818 = vunpack.c.h.b16 %v219
    %v819 = vunpack.c.l.b16 %v220
    %v820 = vunpack.c.h.b16 %v220
    %v821 = vunpack.c.l.b16 %v221
    %v822 = vunpack.c.h.b16 %v221
    %v823 = vunpack.c.l.b16 %v222
    %v824 = vunpack.c.h.b16 %v222
    %v825 = vunpack.c.l.b16 %v223
    %v826 = vunpack.c.h.b16 %v223
    %v827 = vunpack.c.l.b16 %v224
    %v828 = vunpack.c.h.b16 %v224
    %v829 = vunpack.c.l.b16 %v225
    %v830 = vunpack.c.h.b16 %v225
    %v831 = vunpack.c.l.b16 %v226
    %v832 = vunpack.c.h.b16 %v226
    %v833 = vunpack.c.l.b16 %v227
    %v834 = vunpack.c.h.b16 %v227
    %v835 = vunpack.c.l.b16 %v228
    %v836 = vunpack.c.h.b16 %v228
    %v837 = vunpack.c.l.b16 %v229
    %v838 = vunpack.c.h.b16 %v229
    %v839 = vunpack.c.l.b16 %v230
    %v840 = vunpack.c.h.b16 %v230
    %v841 = vunpack.c.l.b16 %v231
    %v842 = vunpack.c.h.b16 %v231
    %v843 = vunpack.c.l.b16 %v232
    %v844 = vunpack.c.h.b16 %v232
    %v845 = vunpack.c.l.b16 %v233
    %v846 = vunpack.c.h.b16 %v233
    %v847 = vunpack.c.l.b16 %v234
    %v848 = vunpack.c.h.b16 %v234
    %v849 = vunpack.c.l.b16 %v235
    %v850 = vunpack.c.h.b16 %v235
    %v851 = vunpack.c.l.b16 %v236
    %v852 = vunpack.c.h.b16 %v236
    %v853 = vunpack.c.l.b16 %v237
    %v854 = vunpack.c.h.b16 %v237
    %v855 = vunpack.c.l.b16 %v238
    %v856 = vunpack.c.h.b16 %v238
    %v857 = vunpack.c.l.b16 %v239
    %v858 = vunpack.c.h.b16 %v239
    %v859 = vunpack.c.l.b16 %v240
    %v860 = vunpack.c.h.b16 %v240
    %v861 = vunpack.c.l.b16 %v241
    %v862 = vunpack.c.h.b16 %v241
    %v863 = vunpack.c.l.b16 %v242
    %v864 = vunpack.c.h.b16 %v242
    %v865 = vunpack.c.l.b16 %v243
    %v866 = vunpack.c.h.b16 %v243
    %v867 = vunpack.c.l.b16 %v244
    %v868 = vunpack.c.h.b16 %v244
    %v869 = vunpack.c.l.b16 %v245
    %v870 = vunpack.c.h.b16 %v245
    %v871 = vunpack.c.l.b16 %v246
    %v872 = vunpack.c.h.b16 %v246
    %v873 = vunpack.c.l.b16 %v247
    %v874 = vunpack.c.h.b16 %v247
    %v875 = vunpack.c.l.b16 %v248
    %v876 = vunpack.c.h.b16 %v248
    %v877 = vunpack.c.l.b16 %v249
    %v878 = vunpack.c.h.b16 %v249
    %v879 = vunpack.c.l.b16 %v250
    %v880 = vunpack.c.h.b16 %v250
    %v881 = vunpack.c.l.b16 %v251
    %v882 = vunpack.c.h.b16 %v251
    %v883 = vunpack.c.l.b16 %v252
    %v884 = vunpack.c.h.b16 %v252
    %v885 = vunpack.c.l.b16 %v253
    %v886 = vunpack.c.h.b16 %v253
    %v887 = vunpack.c.l.b16 %v254
    %v888 = vunpack.c.h.b16 %v254
    %v889 = vpack.c.b16 %v501, %v497
    %v890 = vpack.c.b16 %v502, %v498
    %v891 = vpack.c.b16 %v503, %v499
    %v892 = vpack.c.b16 %v504, %v500
    %v893 = vpack.c.b16 %v509, %v505
    %v894 = vpack.c.b16 %v510, %v506
    %v895 = vpack.c.b16 %v511, %v507
    %v896 = vpack.c.b16 %v512, %v508
    %v897 = vpack.c.b16 %v517, %v513
    %v898 = vpack.c.b16 %v518, %v514
    %v899 = vpack.c.b16 %v519, %v515
    %v900 = vpack.c.b16 %v520, %v516
    %v901 = vpack.c.b16 %v525, %v521
    %v902 = vpack.c.b16 %v526, %v522
    %v903 = vpack.c.b16 %v527, %v523
    %v904 = vpack.c.b16 %v528, %v524
    %v905 = vpack.c.b16 %v533, %v529
    %v906 = vpack.c.b16 %v534, %v530
    %v907 = vpack.c.b16 %v535, %v531
    %v908 = vpack.c.b16 %v536, %v532
    %v909 = vpack.c.b16 %v541, %v537
    %v910 = vpack.c.b16 %v542, %v538
    %v911 = vpack.c.b16 %v543, %v539
    %v912 = vpack.c.b16 %v544, %v540
    %v913 = vpack.c.b16 %v549, %v545
    %v914 = vpack.c.b16 %v550, %v546
    %v915 = vpack.c.b16 %v551, %v547
    %v916 = vpack.c.b16 %v552, %v548
    %v917 = vpack.c.b16 %v557, %v553
    %v918 = vpack.c.b16 %v558, %v554
    %v919 = vpack.c.b16 %v559, %v555
    %v920 = vpack.c.b16 %v560, %v556
    %v921 = vpack.c.b16 %v565, %v561
    %v922 = vpack.c.b16 %v566, %v562
    %v923 = vpack.c.b16 %v567, %v563
    %v924 = vpack.c.b16 %v568, %v564
    %v925 = vpack.c.b16 %v573, %v569
    %v926 = vpack.c.b16 %v574, %v570
    %v927 = vpack.c.b16 %v575, %v571
    %v928 = vpack.c.b16 %v576, %v572
    %v929 = vpack.c.b16 %v581, %v577
    %v930 = vpack.c.b16 %v582, %v578
    %v931 = vpack.c.b16 %v583, %v579
    %v932 = vpack.c.b16 %v584, %v580
    %v933 = vpack.c.b16 %v589, %v585
    %v934 = vpack.c.b16 %v590, %v586
    %v935 = vpack.c.b16 %v591, %v587
    %v936 = vpack.c.b16 %v592, %v588
    %v937 = vpack.c.b16 %v597, %v593
    %v938 = vpack.c.b16 %v598, %v594
    %v939 = vpack.c.b16 %v599, %v595
    %v940 = vpack.c.b16 %v600, %v596
    %v941 = vpack.c.b16 %v605, %v601
    %v942 = vpack.c.b16 %v606, %v602
    %v943 = vpack.c.b16 %v607, %v603
    %v944 = vpack.c.b16 %v608, %v604
    %v945 = vpack.c.b16 %v613, %v609
    %v946 = vpack.c.b16 %v614, %v610
    %v947 = vpack.c.b16 %v615, %v611
    %v948 = vpack.c.b16 %v616, %v612
    %v949 = vpack.c.b16 %v621, %v617
    %v950 = vpack.c.b16 %v622, %v618
    %v951 = vpack.c.b16 %v623, %v619
    %v952 = vpack.c.b16 %v624, %v620
    %v953 = vpack.c.b16 %v629, %v625
    %v954 = vpack.c.b16 %v630, %v626
    %v955 = vpack.c.b16 %v631, %v627
    %v956 = vpack.c.b16 %v632, %v628
    %v957 = vpack.c.b16 %v637, %v633
    %v958 = vpack.c.b16 %v638, %v634
    %v959 = vpack.c.b16 %v639, %v635
    %v960 = vpack.c.b16 %v640, %v636
    %v961 = vpack.c.b16 %v645, %v641
    %v962 = vpack.c.b16 %v646, %v642
    %v963 = vpack.c.b16 %v647, %v643
    %v964 = vpack.c.b16 %v648, %v644
    %v965 = vpack.c.b16 %v653, %v649
    %v966 = vpack.c.b16 %v654, %v650
    %v967 = vpack.c.b16 %v655, %v651
    %v968 = vpack.c.b16 %v656, %v652
    %v969 = vpack.c.b16 %v661, %v657
    %v970 = vpack.c.b16 %v662, %v658
    %v971 = vpack.c.b16 %v663, %v659
    %v972 = vpack.c.b16 %v664, %v660
    %v973 = vpack.c.b16 %v669, %v665
    %v974 = vpack.c.b16 %v670, %v666
    %v975 = vpack.c.b16 %v671, %v667
    %v976 = vpack.c.b16 %v672, %v668
    %v977 = vpack.c.b16 %v677, %v673
    %v978 = vpack.c.b16 %v678, %v674
    %v979 = vpack.c.b16 %v679, %v675
    %v980 = vpack.c.b16 %v680, %v676
    %v981 = vpack.c.b16 %v685, %v681
    %v982 = vpack.c.b16 %v686, %v682
    %v983 = vpack.c.b16 %v687, %v683
    %v984 = vpack.c.b16 %v688, %v684
    %v985 = vpack.c.b16 %v693, %v689
    %v986 = vpack.c.b16 %v694, %v690
    %v987 = vpack.c.b16 %v695, %v691
    %v988 = vpack.c.b16 %v696, %v692
    %v989 = vpack.c.b16 %v701, %v697
    %v990 = vpack.c.b16 %v702, %v698
    %v991 = vpack.c.b16 %v703, %v699
    %v992 = vpack.c.b16 %v704, %v700
    %v993 = vpack.c.b16 %v709, %v705
    %v994 = vpack.c.b16 %v710, %v706
    %v995 = vpack.c.b16 %v711, %v707
    %v996 = vpack.c.b16 %v712, %v708
    %v997 = vpack.c.b16 %v717, %v713
    %v998 = vpack.c.b16 %v718, %v714
    %v999 = vpack.c.b16 %v719, %v715
    %v1000 = vpack.c.b16 %v720, %v716
    %v1001 = vpack.c.b16 %v725, %v721
    %v1002 = vpack.c.b16 %v726, %v722
    %v1003 = vpack.c.b16 %v727, %v723
    %v1004 = vpack.c.b16 %v728, %v724
    %v1005 = vpack.c.b16 %v733, %v729
    %v1006 = vpack.c.b16 %v734, %v730
    %v1007 = vpack.c.b16 %v735, %v731
    %v1008 = vpack.c.b16 %v736, %v732
    %v1009 = vpack.c.b16 %v741, %v737
    %v1010 = vpack.c.b16 %v742, %v738
    %v1011 = vpack.c.b16 %v743, %v739
    %v1012 = vpack.c.b16 %v744, %v740
    %v1013 = vpack.c.b16 %v749, %v745
    %v1014 = vpack.c.b16 %v750, %v746
    %v1015 = vpack.c.b16 %v751, %v747
    %v1016 = vpack.c.b16 %v752, %v748
    %v1017 = vpack.c.b16 %v757, %v753
    %v1018 = vpack.c.b16 %v758, %v754
    %v1019 = vpack.c.b16 %v759, %v755
    %v1020 = vpack.c.b16 %v760, %v756
    %v1021 = vpack.c.b16 %v765, %v761
    %v1022 = vpack.c.b16 %v766, %v762
    %v1023 = vpack.c.b16 %v767, %v763
    %v1024 = vpack.c.b16 %v768, %v764
    %v1025 = vpack.c.b16 %v773, %v769
    %v1026 = vpack.c.b16 %v774, %v770
    %v1027 = vpack.c.b16 %v775, %v771
    %v1028 = vpack.c.b16 %v776, %v772
    %v1029 = vpack.c.b16 %v781, %v777
    %v1030 = vpack.c.b16 %v782, %v778
    %v1031 = vpack.c.b16 %v783, %v779
    %v1032 = vpack.c.b16 %v784, %v780
    %v1033 = vpack.c.b16 %v789, %v785
    %v1034 = vpack.c.b16 %v790, %v786
    %v1035 = vpack.c.b16 %v791, %v787
    %v1036 = vpack.c.b16 %v792, %v788
    %v1037 = vpack.c.b16 %v797, %v793
    %v1038 = vpack.c.b16 %v798, %v794
    %v1039 = vpack.c.b16 %v799, %v795
    %v1040 = vpack.c.b16 %v800, %v796
    %v1041 = vpack.c.b16 %v805, %v801
    %v1042 = vpack.c.b16 %v806, %v802
    %v1043 = vpack.c.b16 %v807, %v803
    %v1044 = vpack.c.b16 %v808, %v804
    %v1045 = vpack.c.b16 %v813, %v809
    %v1046 = vpack.c.b16 %v814, %v810
    %v1047 = vpack.c.b16 %v815, %v811
    %v1048 = vpack.c.b16 %v816, %v812
    %v1049 = vpack.c.b16 %v821, %v817
    %v1050 = vpack.c.b16 %v822, %v818
    %v1051 = vpack.c.b16 %v823, %v819
    %v1052 = vpack.c.b16 %v824, %v820
    %v1053 = vpack.c.b16 %v829, %v825
    %v1054 = vpack.c.b16 %v830, %v826
    %v1055 = vpack.c.b16 %v831, %v827
    %v1056 = vpack.c.b16 %v832, %v828
    %v1057 = vpack.c.b16 %v837, %v833
    %v1058 = vpack.c.b16 %v838, %v834
    %v1059 = vpack.c.b16 %v839, %v835
    %v1060 = vpack.c.b16 %v840, %v836
    %v1061 = vpack.c.b16 %v845, %v841
    %v1062 = vpack.c.b16 %v846, %v842
    %v1063 = vpack.c.b16 %v847, %v843
    %v1064 = vpack.c.b16 %v848, %v844
    %v1065 = vpack.c.b16 %v853, %v849
    %v1066 = vpack.c.b16 %v854, %v850
    %v1067 = vpack.c.b16 %v855, %v851
    %v1068 = vpack.c.b16 %v856, %v852
    %v1069 = vpack.c.b16 %v861, %v857
    %v1070 = vpack.c.b16 %v862, %v858
    %v1071 = vpack.c.b16 %v863, %v859
    %v1072 = vpack.c.b16 %v864, %v860
    %v1073 = vpack.c.b16 %v869, %v865
    %v1074 = vpack.c.b16 %v870, %v866
    %v1075 = vpack.c.b16 %v871, %v867
    %v1076 = vpack.c.b16 %v872, %v868
    %v1077 = vpack.c.b16 %v877, %v873
    %v1078 = vpack.c.b16 %v878, %v874
    %v1079 = vpack.c.b16 %v879, %v875
    %v1080 = vpack.c.b16 %v880, %v876
    %v1081 = vpack.c.b16 %v885, %v881
    %v1082 = vpack.c.b16 %v886, %v882
    %v1083 = vpack.c.b16 %v887, %v883
    %v1084 = vpack.c.b16 %v888, %v884
    %vm1281 = vcmask 130048
    %v1283 = vsel %vm1281, %v294, 0
    %1285 = vmatprep.subr.bf16.mxu0 %v890
    %1286 = vmatpush1.bf16.msra.mxu0 %v889
    %1287 = vmatprep.subr.bf16.mxu0 %v894
    %1288 = vmatpush1.bf16.msra.mxu0 %v893
    %1289 = vmatprep.subr.bf16.mxu0 %v898
    %1290 = vmatpush1.bf16.msra.mxu0 %v897
    %1291 = vmatprep.subr.bf16.mxu0 %v902
    %1292 = vmatpush1.bf16.msra.mxu0 %v901
    %1293 = vmatprep.subr.bf16.mxu0 %v906
    %1294 = vmatpush1.bf16.msra.mxu0 %v905
    %1295 = vmatprep.subr.bf16.mxu0 %v910
    %1296 = vmatpush1.bf16.msra.mxu0 %v909
    %1297 = vmatprep.subr.bf16.mxu0 %v914
    %1298 = vmatpush1.bf16.msra.mxu0 %v913
    %1299 = vmatprep.subr.bf16.mxu0 %v918
    %1300 = vmatpush1.bf16.msra.mxu0 %v917
    %1301 = vmatprep.subr.bf16.mxu0 %v922
    %1302 = vmatpush1.bf16.msra.mxu0 %v921
    %1303 = vmatprep.subr.bf16.mxu0 %v926
    %1304 = vmatpush1.bf16.msra.mxu0 %v925
    %1305 = vmatprep.subr.bf16.mxu0 %v930
    %1306 = vmatpush1.bf16.msra.mxu0 %v929
    %1307 = vmatprep.subr.bf16.mxu0 %v934
    %1308 = vmatpush1.bf16.msra.mxu0 %v933
    %1309 = vmatprep.subr.bf16.mxu0 %v938
    %1310 = vmatpush1.bf16.msra.mxu0 %v937
    %1311 = vmatprep.subr.bf16.mxu0 %v942
    %1312 = vmatpush1.bf16.msra.mxu0 %v941
    %1313 = vmatprep.subr.bf16.mxu0 %v946
    %1314 = vmatpush1.bf16.msra.mxu0 %v945
    %1315 = vmatprep.subr.bf16.mxu0 %v950
    %1316 = vmatpush1.bf16.msra.mxu0 %v949
    %1317 = vmatprep.mubr.bf16.mxu0 %v289
    %1318 = vmatmul.mubr.bf16.gmra.mrb[0].mxu0 %v288
    %v1319 = vpop.f32.mrb[0].mxu0
    %v1320 = vadd.f32 %v260, %v1319
    %v1321 = vpop.f32.mrb[0].mxu0
    %v1322 = vadd.f32 %v264, %v1321
    %v1323 = vpop.f32.mrb[0].mxu0
    %v1324 = vpop.f32.mrb[0].mxu0
    %1325 = vdwg.mxu0
    %1326 = vmatprep.subr.bf16.mxu0 %v954
    %1327 = vmatpush1.bf16.msra.mxu0 %v953
    %1328 = vmatprep.subr.bf16.mxu0 %v958
    %1329 = vmatpush1.bf16.msra.mxu0 %v957
    %1330 = vmatprep.subr.bf16.mxu0 %v962
    %1331 = vmatpush1.bf16.msra.mxu0 %v961
    %1332 = vmatprep.subr.bf16.mxu0 %v966
    %1333 = vmatpush1.bf16.msra.mxu0 %v965
    %1334 = vmatprep.subr.bf16.mxu0 %v970
    %1335 = vmatpush1.bf16.msra.mxu0 %v969
    %1336 = vmatprep.subr.bf16.mxu0 %v974
    %1337 = vmatpush1.bf16.msra.mxu0 %v973
    %1338 = vmatprep.subr.bf16.mxu0 %v978
    %1339 = vmatpush1.bf16.msra.mxu0 %v977
    %1340 = vmatprep.subr.bf16.mxu0 %v982
    %1341 = vmatpush1.bf16.msra.mxu0 %v981
    %1342 = vmatprep.subr.bf16.mxu0 %v986
    %1343 = vmatpush1.bf16.msra.mxu0 %v985
    %1344 = vmatprep.subr.bf16.mxu0 %v990
    %1345 = vmatpush1.bf16.msra.mxu0 %v989
    %1346 = vmatprep.subr.bf16.mxu0 %v994
    %1347 = vmatpush1.bf16.msra.mxu0 %v993
    %1348 = vmatprep.subr.bf16.mxu0 %v998
    %1349 = vmatpush1.bf16.msra.mxu0 %v997
    %1350 = vmatprep.subr.bf16.mxu0 %v1002
    %1351 = vmatpush1.bf16.msra.mxu0 %v1001
    %1352 = vmatprep.subr.bf16.mxu0 %v1006
    %1353 = vmatpush1.bf16.msra.mxu0 %v1005
    %1354 = vmatprep.subr.bf16.mxu0 %v1010
    %1355 = vmatpush1.bf16.msra.mxu0 %v1009
    %1356 = vmatprep.subr.bf16.mxu0 %v1014
    %1357 = vmatpush1.bf16.msra.mxu0 %v1013
    %1358 = vmatprep.mubr.bf16.mxu0 %v291
    %1359 = vmatmul.mubr.bf16.gmra.mrb[0].mxu0 %v290
    %v1360 = vpop.f32.mrb[0].mxu0
    %v1361 = vadd.f32 %v1320, %v1360
    %v1362 = vpop.f32.mrb[0].mxu0
    %v1363 = vadd.f32 %v1322, %v1362
    %v1364 = vpop.f32.mrb[0].mxu0
    %v1365 = vpop.f32.mrb[0].mxu0
    %1366 = vdwg.mxu0
    %1367 = vmatprep.subr.bf16.mxu0 %v1018
    %1368 = vmatpush1.bf16.msra.mxu0 %v1017
    %1369 = vmatprep.subr.bf16.mxu0 %v1022
    %1370 = vmatpush1.bf16.msra.mxu0 %v1021
    %1371 = vmatprep.subr.bf16.mxu0 %v1026
    %1372 = vmatpush1.bf16.msra.mxu0 %v1025
    %1373 = vmatprep.subr.bf16.mxu0 %v1030
    %1374 = vmatpush1.bf16.msra.mxu0 %v1029
    %1375 = vmatprep.subr.bf16.mxu0 %v1034
    %1376 = vmatpush1.bf16.msra.mxu0 %v1033
    %1377 = vmatprep.subr.bf16.mxu0 %v1038
    %1378 = vmatpush1.bf16.msra.mxu0 %v1037
    %1379 = vmatprep.subr.bf16.mxu0 %v1042
    %1380 = vmatpush1.bf16.msra.mxu0 %v1041
    %1381 = vmatprep.subr.bf16.mxu0 %v1046
    %1382 = vmatpush1.bf16.msra.mxu0 %v1045
    %1383 = vmatprep.subr.bf16.mxu0 %v1050
    %1384 = vmatpush1.bf16.msra.mxu0 %v1049
    %1385 = vmatprep.subr.bf16.mxu0 %v1054
    %1386 = vmatpush1.bf16.msra.mxu0 %v1053
    %1387 = vmatprep.subr.bf16.mxu0 %v1058
    %1388 = vmatpush1.bf16.msra.mxu0 %v1057
    %1389 = vmatprep.subr.bf16.mxu0 %v1062
    %1390 = vmatpush1.bf16.msra.mxu0 %v1061
    %1391 = vmatprep.subr.bf16.mxu0 %v1066
    %1392 = vmatpush1.bf16.msra.mxu0 %v1065
    %1393 = vmatprep.subr.bf16.mxu0 %v1070
    %1394 = vmatpush1.bf16.msra.mxu0 %v1069
    %1395 = vmatprep.subr.bf16.mxu0 %v1074
    %1396 = vmatpush1.bf16.msra.mxu0 %v1073
    %1397 = vmatprep.subr.bf16.mxu0 %v1078
    %1398 = vmatpush1.bf16.msra.mxu0 %v1077
    %1399 = vmatprep.mubr.bf16.mxu0 %v293
    %1400 = vmatmul.mubr.bf16.gmra.mrb[0].mxu0 %v292
    %v1401 = vpop.f32.mrb[0].mxu0
    %v1402 = vadd.f32 %v1361, %v1401
    %v1403 = vpop.f32.mrb[0].mxu0
    %v1404 = vadd.f32 %v1363, %v1403
    %v1405 = vpop.f32.mrb[0].mxu0
    %v1406 = vpop.f32.mrb[0].mxu0
    %1407 = vdwg.mxu0
    %1408 = vmatprep.subr.bf16.mxu0 %v1082
    %1409 = vmatpush1.bf16.msra.mxu0 %v1081
    %1410 = vmatprep.subr.bf16.mxu0 0
    %1411 = vmatpush1.bf16.msra.mxu0 0
    %1412 = vmatprep.subr.bf16.mxu0 0
    %1413 = vmatpush1.bf16.msra.mxu0 0
    %1414 = vmatprep.subr.bf16.mxu0 0
    %1415 = vmatpush1.bf16.msra.mxu0 0
    %1416 = vmatprep.subr.bf16.mxu0 0
    %1417 = vmatpush1.bf16.msra.mxu0 0
    %1418 = vmatprep.subr.bf16.mxu0 0
    %1419 = vmatpush1.bf16.msra.mxu0 0
    %1420 = vmatprep.subr.bf16.mxu0 0
    %1421 = vmatpush1.bf16.msra.mxu0 0
    %1422 = vmatprep.subr.bf16.mxu0 0
    %1423 = vmatpush1.bf16.msra.mxu0 0
    %1424 = vmatprep.subr.bf16.mxu0 0
    %1425 = vmatpush1.bf16.msra.mxu0 0
    %1426 = vmatprep.subr.bf16.mxu0 0
    %1427 = vmatpush1.bf16.msra.mxu0 0
    %1428 = vmatprep.subr.bf16.mxu0 0
    %1429 = vmatpush1.bf16.msra.mxu0 0
    %1430 = vmatprep.subr.bf16.mxu0 0
    %1431 = vmatpush1.bf16.msra.mxu0 0
    %1432 = vmatprep.subr.bf16.mxu0 0
    %1433 = vmatpush1.bf16.msra.mxu0 0
    %1434 = vmatprep.subr.bf16.mxu0 0
    %1435 = vmatpush1.bf16.msra.mxu0 0
    %1436 = vmatprep.subr.bf16.mxu0 0
    %1437 = vmatpush1.bf16.msra.mxu0 0
    %1438 = vmatprep.subr.bf16.mxu0 0
    %1439 = vmatpush1.bf16.msra.mxu0 0
    %1440 = vmatprep.mubr.bf16.mxu0 0
    %1441 = vmatmul.mubr.bf16.gmra.mrb[0].mxu0 %v1283
    %v1442 = vpop.f32.mrb[0].mxu0
    %v1443 = vadd.f32 %v1402, %v1442
    %v1444 = vpop.f32.mrb[0].mxu0
    %v1445 = vadd.f32 %v1404, %v1444
    %v1446 = vpop.f32.mrb[0].mxu0
    %v1447 = vpop.f32.mrb[0].mxu0
    %1448 = vdwg.mxu0
    %1449 = vmatprep.subr.bf16.mxu0 %v892
    %1450 = vmatpush1.bf16.msra.mxu0 %v891
    %1451 = vmatprep.subr.bf16.mxu0 %v896
    %1452 = vmatpush1.bf16.msra.mxu0 %v895
    %1453 = vmatprep.subr.bf16.mxu0 %v900
    %1454 = vmatpush1.bf16.msra.mxu0 %v899
    %1455 = vmatprep.subr.bf16.mxu0 %v904
    %1456 = vmatpush1.bf16.msra.mxu0 %v903
    %1457 = vmatprep.subr.bf16.mxu0 %v908
    %1458 = vmatpush1.bf16.msra.mxu0 %v907
    %1459 = vmatprep.subr.bf16.mxu0 %v912
    %1460 = vmatpush1.bf16.msra.mxu0 %v911
    %1461 = vmatprep.subr.bf16.mxu0 %v916
    %1462 = vmatpush1.bf16.msra.mxu0 %v915
    %1463 = vmatprep.subr.bf16.mxu0 %v920
    %1464 = vmatpush1.bf16.msra.mxu0 %v919
    %1465 = vmatprep.subr.bf16.mxu0 %v924
    %1466 = vmatpush1.bf16.msra.mxu0 %v923
    %1467 = vmatprep.subr.bf16.mxu0 %v928
    %1468 = vmatpush1.bf16.msra.mxu0 %v927
    %1469 = vmatprep.subr.bf16.mxu0 %v932
    %1470 = vmatpush1.bf16.msra.mxu0 %v931
    %1471 = vmatprep.subr.bf16.mxu0 %v936
    %1472 = vmatpush1.bf16.msra.mxu0 %v935
    %1473 = vmatprep.subr.bf16.mxu0 %v940
    %1474 = vmatpush1.bf16.msra.mxu0 %v939
    %1475 = vmatprep.subr.bf16.mxu0 %v944
    %1476 = vmatpush1.bf16.msra.mxu0 %v943
    %1477 = vmatprep.subr.bf16.mxu0 %v948
    %1478 = vmatpush1.bf16.msra.mxu0 %v947
    %1479 = vmatprep.subr.bf16.mxu0 %v952
    %1480 = vmatpush1.bf16.msra.mxu0 %v951
    %1481 = vmatprep.mubr.bf16.mxu0 %v289
    %1482 = vmatmul.mubr.bf16.gmra.mrb[0].mxu0 %v288
    %v1483 = vpop.f32.mrb[0].mxu0
    %v1484 = vadd.f32 %v268, %v1483
    %v1485 = vpop.f32.mrb[0].mxu0
    %v1486 = vadd.f32 %v272, %v1485
    %v1487 = vpop.f32.mrb[0].mxu0
    %v1488 = vpop.f32.mrb[0].mxu0
    %1489 = vdwg.mxu0
    %1490 = vmatprep.subr.bf16.mxu0 %v956
    %1491 = vmatpush1.bf16.msra.mxu0 %v955
    %1492 = vmatprep.subr.bf16.mxu0 %v960
    %1493 = vmatpush1.bf16.msra.mxu0 %v959
    %1494 = vmatprep.subr.bf16.mxu0 %v964
    %1495 = vmatpush1.bf16.msra.mxu0 %v963
    %1496 = vmatprep.subr.bf16.mxu0 %v968
    %1497 = vmatpush1.bf16.msra.mxu0 %v967
    %1498 = vmatprep.subr.bf16.mxu0 %v972
    %1499 = vmatpush1.bf16.msra.mxu0 %v971
    %1500 = vmatprep.subr.bf16.mxu0 %v976
    %1501 = vmatpush1.bf16.msra.mxu0 %v975
    %1502 = vmatprep.subr.bf16.mxu0 %v980
    %1503 = vmatpush1.bf16.msra.mxu0 %v979
    %1504 = vmatprep.subr.bf16.mxu0 %v984
    %1505 = vmatpush1.bf16.msra.mxu0 %v983
    %1506 = vmatprep.subr.bf16.mxu0 %v988
    %1507 = vmatpush1.bf16.msra.mxu0 %v987
    %1508 = vmatprep.subr.bf16.mxu0 %v992
    %1509 = vmatpush1.bf16.msra.mxu0 %v991
    %1510 = vmatprep.subr.bf16.mxu0 %v996
    %1511 = vmatpush1.bf16.msra.mxu0 %v995
    %1512 = vmatprep.subr.bf16.mxu0 %v1000
    %1513 = vmatpush1.bf16.msra.mxu0 %v999
    %1514 = vmatprep.subr.bf16.mxu0 %v1004
    %1515 = vmatpush1.bf16.msra.mxu0 %v1003
    %1516 = vmatprep.subr.bf16.mxu0 %v1008
    %1517 = vmatpush1.bf16.msra.mxu0 %v1007
    %1518 = vmatprep.subr.bf16.mxu0 %v1012
    %1519 = vmatpush1.bf16.msra.mxu0 %v1011
    %1520 = vmatprep.subr.bf16.mxu0 %v1016
    %1521 = vmatpush1.bf16.msra.mxu0 %v1015
    %1522 = vmatprep.mubr.bf16.mxu0 %v291
    %1523 = vmatmul.mubr.bf16.gmra.mrb[0].mxu0 %v290
    %v1524 = vpop.f32.mrb[0].mxu0
    %v1525 = vadd.f32 %v1484, %v1524
    %v1526 = vpop.f32.mrb[0].mxu0
    %v1527 = vadd.f32 %v1486, %v1526
    %v1528 = vpop.f32.mrb[0].mxu0
    %v1529 = vpop.f32.mrb[0].mxu0
    %1530 = vdwg.mxu0
    %1531 = vmatprep.subr.bf16.mxu0 %v1020
    %1532 = vmatpush1.bf16.msra.mxu0 %v1019
    %1533 = vmatprep.subr.bf16.mxu0 %v1024
    %1534 = vmatpush1.bf16.msra.mxu0 %v1023
    %1535 = vmatprep.subr.bf16.mxu0 %v1028
    %1536 = vmatpush1.bf16.msra.mxu0 %v1027
    %1537 = vmatprep.subr.bf16.mxu0 %v1032
    %1538 = vmatpush1.bf16.msra.mxu0 %v1031
    %1539 = vmatprep.subr.bf16.mxu0 %v1036
    %1540 = vmatpush1.bf16.msra.mxu0 %v1035
    %1541 = vmatprep.subr.bf16.mxu0 %v1040
    %1542 = vmatpush1.bf16.msra.mxu0 %v1039
    %1543 = vmatprep.subr.bf16.mxu0 %v1044
    %1544 = vmatpush1.bf16.msra.mxu0 %v1043
    %1545 = vmatprep.subr.bf16.mxu0 %v1048
    %1546 = vmatpush1.bf16.msra.mxu0 %v1047
    %1547 = vmatprep.subr.bf16.mxu0 %v1052
    %1548 = vmatpush1.bf16.msra.mxu0 %v1051
    %1549 = vmatprep.subr.bf16.mxu0 %v1056
    %1550 = vmatpush1.bf16.msra.mxu0 %v1055
    %1551 = vmatprep.subr.bf16.mxu0 %v1060
    %1552 = vmatpush1.bf16.msra.mxu0 %v1059
    %1553 = vmatprep.subr.bf16.mxu0 %v1064
    %1554 = vmatpush1.bf16.msra.mxu0 %v1063
    %1555 = vmatprep.subr.bf16.mxu0 %v1068
    %1556 = vmatpush1.bf16.msra.mxu0 %v1067
    %1557 = vmatprep.subr.bf16.mxu0 %v1072
    %1558 = vmatpush1.bf16.msra.mxu0 %v1071
    %1559 = vmatprep.subr.bf16.mxu0 %v1076
    %1560 = vmatpush1.bf16.msra.mxu0 %v1075
    %1561 = vmatprep.subr.bf16.mxu0 %v1080
    %1562 = vmatpush1.bf16.msra.mxu0 %v1079
    %1563 = vmatprep.mubr.bf16.mxu0 %v293
    %1564 = vmatmul.mubr.bf16.gmra.mrb[0].mxu0 %v292
    %v1565 = vpop.f32.mrb[0].mxu0
    %v1566 = vadd.f32 %v1525, %v1565
    %v1567 = vpop.f32.mrb[0].mxu0
    %v1568 = vadd.f32 %v1527, %v1567
    %v1569 = vpop.f32.mrb[0].mxu0
    %v1570 = vpop.f32.mrb[0].mxu0
    %1571 = vdwg.mxu0
    %1572 = vmatprep.subr.bf16.mxu0 %v1084
    %1573 = vmatpush1.bf16.msra.mxu0 %v1083
    %1574 = vmatprep.subr.bf16.mxu0 0
    %1575 = vmatpush1.bf16.msra.mxu0 0
    %1576 = vmatprep.subr.bf16.mxu0 0
    %1577 = vmatpush1.bf16.msra.mxu0 0
    %1578 = vmatprep.subr.bf16.mxu0 0
    %1579 = vmatpush1.bf16.msra.mxu0 0
    %1580 = vmatprep.subr.bf16.mxu0 0
    %1581 = vmatpush1.bf16.msra.mxu0 0
    %1582 = vmatprep.subr.bf16.mxu0 0
    %1583 = vmatpush1.bf16.msra.mxu0 0
    %1584 = vmatprep.subr.bf16.mxu0 0
    %1585 = vmatpush1.bf16.msra.mxu0 0
    %1586 = vmatprep.subr.bf16.mxu0 0
    %1587 = vmatpush1.bf16.msra.mxu0 0
    %1588 = vmatprep.subr.bf16.mxu0 0
    %1589 = vmatpush1.bf16.msra.mxu0 0
    %1590 = vmatprep.subr.bf16.mxu0 0
    %1591 = vmatpush1.bf16.msra.mxu0 0
    %1592 = vmatprep.subr.bf16.mxu0 0
    %1593 = vmatpush1.bf16.msra.mxu0 0
    %1594 = vmatprep.subr.bf16.mxu0 0
    %1595 = vmatpush1.bf16.msra.mxu0 0
    %1596 = vmatprep.subr.bf16.mxu0 0
    %1597 = vmatpush1.bf16.msra.mxu0 0
    %1598 = vmatprep.subr.bf16.mxu0 0
    %1599 = vmatpush1.bf16.msra.mxu0 0
    %1600 = vmatprep.subr.bf16.mxu0 0
    %1601 = vmatpush1.bf16.msra.mxu0 0
    %1602 = vmatprep.subr.bf16.mxu0 0
    %1603 = vmatpush1.bf16.msra.mxu0 0
    %1604 = vmatprep.mubr.bf16.mxu0 0
    %1605 = vmatmul.mubr.bf16.gmra.mrb[0].mxu0 %v1283
    %v1606 = vpop.f32.mrb[0].mxu0
    %v1607 = vadd.f32 %v1566, %v1606
    %v1608 = vpop.f32.mrb[0].mxu0
    %v1609 = vadd.f32 %v1568, %v1608
    %v1610 = vpop.f32.mrb[0].mxu0
    %v1611 = vpop.f32.mrb[0].mxu0
    %1612 = vdwg.mxu0
    %v1613 = vmax.f32 %v1443, 0.0
    %v1614 = vmax.f32 %v1445, 0.0
    %v1615 = vmax.f32 %v1607, 0.0
    %v1616 = vmax.f32 %v1609, 0.0
    %v1617 = vpack.c.bf16 %v1613, %v1613
    %v1618 = vpack.c.bf16 %v1614, %v1614
    %v1619 = vpack.c.bf16 %v1615, %v1615
    %v1620 = vpack.c.bf16 %v1616, %v1616
    %v1621 = vld [vmem:[#allocation4] sm:$0xff]
    %v1622 = vld [vmem:[#allocation4 + $0x8] sm:$0xff]
    %v1623 = vld [vmem:[#allocation4 + $0x10] sm:$0xff]
    %v1624 = vld [vmem:[#allocation4 + $0x18] sm:$0xff]
    %v1625 = vld [vmem:[#allocation4 + $0x20] sm:$0xff]
    %v1626 = vld [vmem:[#allocation4 + $0x28] sm:$0xff]
    %v1627 = vld [vmem:[#allocation4 + $0x30] sm:$0xff]
    %v1628 = vld [vmem:[#allocation4 + $0x38] sm:$0xff]
    %v1629 = vld [vmem:[#allocation4 + $0x40] sm:$0xff]
    %v1630 = vld [vmem:[#allocation4 + $0x48] sm:$0xff]
    %v1631 = vld [vmem:[#allocation4 + $0x50] sm:$0xff]
    %v1632 = vld [vmem:[#allocation4 + $0x58] sm:$0xff]
    %v1633 = vld [vmem:[#allocation4 + $0x60] sm:$0xff]
    %v1634 = vld [vmem:[#allocation4 + $0x68] sm:$0xff]
    %v1635 = vld [vmem:[#allocation4 + $0x70] sm:$0xff]
    %v1636 = vld [vmem:[#allocation4 + $0x78] sm:$0xff]
    %v1637 = vld [vmem:[#allocation4 + $0x80] sm:$0xff]
    %v1638 = vld [vmem:[#allocation4 + $0x88] sm:$0xff]
    %v1639 = vld [vmem:[#allocation4 + $0x90] sm:$0xff]
    %v1640 = vld [vmem:[#allocation4 + $0x98] sm:$0xff]
    %v1641 = vld [vmem:[#allocation4 + $0xa0] sm:$0xff]
    %v1642 = vld [vmem:[#allocation4 + $0xa8] sm:$0xff]
    %v1643 = vld [vmem:[#allocation4 + $0xb0] sm:$0xff]
    %v1644 = vld [vmem:[#allocation4 + $0xb8] sm:$0xff]
    %v1645 = vld [vmem:[#allocation4 + $0xc0] sm:$0xff]
    %v1646 = vld [vmem:[#allocation4 + $0xc8] sm:$0xff]
    %v1647 = vld [vmem:[#allocation4 + $0xd0] sm:$0xff]
    %v1648 = vld [vmem:[#allocation4 + $0xd8] sm:$0xff]
    %v1649 = vld [vmem:[#allocation4 + $0xe0] sm:$0xff]
    %v1650 = vld [vmem:[#allocation4 + $0xe8] sm:$0xff]
    %v1651 = vld [vmem:[#allocation4 + $0xf0] sm:$0xff]
    %v1652 = vld [vmem:[#allocation4 + $0xf8] sm:$0xff]
    %v1653 = vld [vmem:[#allocation4 + $0x100] sm:$0xff]
    %v1654 = vld [vmem:[#allocation4 + $0x108] sm:$0xff]
    %v1655 = vld [vmem:[#allocation4 + $0x110] sm:$0xff]
    %v1656 = vld [vmem:[#allocation4 + $0x118] sm:$0xff]
    %v1657 = vld [vmem:[#allocation4 + $0x120] sm:$0xff]
    %v1658 = vld [vmem:[#allocation4 + $0x128] sm:$0xff]
    %v1659 = vld [vmem:[#allocation4 + $0x130] sm:$0xff]
    %v1660 = vld [vmem:[#allocation4 + $0x138] sm:$0xff]
    %v1661 = vld [vmem:[#allocation4 + $0x140] sm:$0xff]
    %v1662 = vld [vmem:[#allocation4 + $0x148] sm:$0xff]
    %v1663 = vld [vmem:[#allocation4 + $0x150] sm:$0xff]
    %v1664 = vld [vmem:[#allocation4 + $0x158] sm:$0xff]
    %v1665 = vld [vmem:[#allocation4 + $0x160] sm:$0xff]
    %v1666 = vld [vmem:[#allocation4 + $0x168] sm:$0xff]
    %v1667 = vld [vmem:[#allocation4 + $0x170] sm:$0xff]
    %v1668 = vld [vmem:[#allocation4 + $0x178] sm:$0xff]
    %v1669 = vld [vmem:[#allocation4 + $0x180] sm:$0xff]
    %v1670 = vld [vmem:[#allocation4 + $0x188] sm:$0xff]
    %v1671 = vld [vmem:[#allocation4 + $0x190] sm:$0xff]
    %v1672 = vld [vmem:[#allocation4 + $0x198] sm:$0xff]
    %v1673 = vld [vmem:[#allocation4 + $0x1a0] sm:$0xff]
    %v1674 = vld [vmem:[#allocation4 + $0x1a8] sm:$0xff]
    %v1675 = vld [vmem:[#allocation4 + $0x1b0] sm:$0xff]
    %v1676 = vld [vmem:[#allocation4 + $0x1b8] sm:$0xff]
    %v1677 = vld [vmem:[#allocation4 + $0x1c0] sm:$0xff]
    %v1678 = vld [vmem:[#allocation4 + $0x1c8] sm:$0xff]
    %v1679 = vld [vmem:[#allocation4 + $0x1d0] sm:$0xff]
    %v1680 = vld [vmem:[#allocation4 + $0x1d8] sm:$0xff]
    %v1681 = vld [vmem:[#allocation4 + $0x1e0] sm:$0xff]
    %v1682 = vld [vmem:[#allocation4 + $0x1e8] sm:$0xff]
    %v1683 = vld [vmem:[#allocation4 + $0x1f0] sm:$0xff]
    %v1684 = vld [vmem:[#allocation4 + $0x1f8] sm:$0xff]
    %v1685 = vld [vmem:[#allocation4 + $0x200] sm:$0xff]
    %v1686 = vld [vmem:[#allocation4 + $0x208] sm:$0xff]
    %v1687 = vld [vmem:[#allocation4 + $0x210] sm:$0xff]
    %v1688 = vld [vmem:[#allocation4 + $0x218] sm:$0xff]
    %v1689 = vld [vmem:[#allocation4 + $0x220] sm:$0xff]
    %v1690 = vld [vmem:[#allocation4 + $0x228] sm:$0xff]
    %v1691 = vld [vmem:[#allocation4 + $0x230] sm:$0xff]
    %v1692 = vld [vmem:[#allocation4 + $0x238] sm:$0xff]
    %v1693 = vld [vmem:[#allocation4 + $0x240] sm:$0xff]
    %v1694 = vld [vmem:[#allocation4 + $0x248] sm:$0xff]
    %v1695 = vld [vmem:[#allocation4 + $0x250] sm:$0xff]
    %v1696 = vld [vmem:[#allocation4 + $0x258] sm:$0xff]
    %v1697 = vld [vmem:[#allocation4 + $0x260] sm:$0xff]
    %v1698 = vld [vmem:[#allocation4 + $0x268] sm:$0xff]
    %v1699 = vld [vmem:[#allocation4 + $0x270] sm:$0xff]
    %v1700 = vld [vmem:[#allocation4 + $0x278] sm:$0xff]
    %v1701 = vld [vmem:[#allocation4 + $0x280] sm:$0xff]
    %v1702 = vld [vmem:[#allocation4 + $0x288] sm:$0xff]
    %v1703 = vld [vmem:[#allocation4 + $0x290] sm:$0xff]
    %v1704 = vld [vmem:[#allocation4 + $0x298] sm:$0xff]
    %v1705 = vld [vmem:[#allocation4 + $0x2a0] sm:$0xff]
    %v1706 = vld [vmem:[#allocation4 + $0x2a8] sm:$0xff]
    %v1707 = vld [vmem:[#allocation4 + $0x2b0] sm:$0xff]
    %v1708 = vld [vmem:[#allocation4 + $0x2b8] sm:$0xff]
    %v1709 = vld [vmem:[#allocation4 + $0x2c0] sm:$0xff]
    %v1710 = vld [vmem:[#allocation4 + $0x2c8] sm:$0xff]
    %v1711 = vld [vmem:[#allocation4 + $0x2d0] sm:$0xff]
    %v1712 = vld [vmem:[#allocation4 + $0x2d8] sm:$0xff]
    %v1713 = vld [vmem:[#allocation4 + $0x2e0] sm:$0xff]
    %v1714 = vld [vmem:[#allocation4 + $0x2e8] sm:$0xff]
    %v1715 = vld [vmem:[#allocation4 + $0x2f0] sm:$0xff]
    %v1716 = vld [vmem:[#allocation4 + $0x2f8] sm:$0xff]
    %v1717 = vld [vmem:[#allocation4 + $0x300] sm:$0xff]
    %v1718 = vld [vmem:[#allocation4 + $0x308] sm:$0xff]
    %v1719 = vld [vmem:[#allocation4 + $0x310] sm:$0xff]
    %v1720 = vld [vmem:[#allocation4 + $0x318] sm:$0xff]
    %v1721 = vld [vmem:[#allocation4 + $0x320] sm:$0xff]
    %v1722 = vld [vmem:[#allocation4 + $0x328] sm:$0xff]
    %v1723 = vld [vmem:[#allocation4 + $0x330] sm:$0xff]
    %v1724 = vld [vmem:[#allocation4 + $0x338] sm:$0xff]
    %v1725 = vld [vmem:[#allocation4 + $0x340] sm:$0xff]
    %v1726 = vld [vmem:[#allocation4 + $0x348] sm:$0xff]
    %v1727 = vld [vmem:[#allocation4 + $0x350] sm:$0xff]
    %v1728 = vld [vmem:[#allocation4 + $0x358] sm:$0xff]
    %v1729 = vld [vmem:[#allocation4 + $0x360] sm:$0xff]
    %v1730 = vld [vmem:[#allocation4 + $0x368] sm:$0xff]
    %v1731 = vld [vmem:[#allocation4 + $0x370] sm:$0xff]
    %v1732 = vld [vmem:[#allocation4 + $0x378] sm:$0xff]
    %v1733 = vld [vmem:[#allocation4 + $0x380] sm:$0xff]
    %v1734 = vld [vmem:[#allocation4 + $0x388] sm:$0xff]
    %v1735 = vld [vmem:[#allocation4 + $0x390] sm:$0xff]
    %v1736 = vld [vmem:[#allocation4 + $0x398] sm:$0xff]
    %v1737 = vld [vmem:[#allocation4 + $0x3a0] sm:$0xff]
    %v1738 = vld [vmem:[#allocation4 + $0x3a8] sm:$0xff]
    %v1739 = vld [vmem:[#allocation4 + $0x3b0] sm:$0xff]
    %v1740 = vld [vmem:[#allocation4 + $0x3b8] sm:$0xff]
    %v1741 = vld [vmem:[#allocation4 + $0x3c0] sm:$0xff]
    %v1742 = vld [vmem:[#allocation4 + $0x3c8] sm:$0xff]
    %v1743 = vld [vmem:[#allocation4 + $0x3d0] sm:$0xff]
    %v1744 = vld [vmem:[#allocation4 + $0x3d8] sm:$0xff]
    %v1745 = vld [vmem:[#allocation4 + $0x3e0] sm:$0xff]
    %v1746 = vld [vmem:[#allocation4 + $0x3e8] sm:$0xff]
    %v1747 = vld [vmem:[#allocation4 + $0x3f0] sm:$0xff]
    %v1748 = vld [vmem:[#allocation4 + $0x3f8] sm:$0xff]
    %v1749 = vld [vmem:[%s4] sm:$0xf]
    %v1751 = vlaneseq
    %v1752 = vshrl.u32 %v1751, 7
    %v1753 = vsub.s32 0, %v1752
    %v1754 = vrot.slane %v1749, %v1753
    %v1755 = vlaneseq
    %v1756 = vshrl.u32 %v1755, 7
    %v1757 = vsub.s32 1, %v1756
    %v1758 = vrot.slane %v1749, %v1757
    %v1759 = vlaneseq
    %v1760 = vshrl.u32 %v1759, 7
    %v1761 = vsub.s32 2, %v1760
    %v1762 = vrot.slane %v1749, %v1761
    %v1763 = vlaneseq
    %v1764 = vshrl.u32 %v1763, 7
    %v1765 = vsub.s32 3, %v1764
    %v1766 = vrot.slane %v1749, %v1765
    %v1899 = vunpack.c.l.b16 %v1621
    %v1900 = vunpack.c.h.b16 %v1621
    %v1901 = vunpack.c.l.b16 %v1622
    %v1902 = vunpack.c.h.b16 %v1622
    %v1903 = vunpack.c.l.b16 %v1623
    %v1904 = vunpack.c.h.b16 %v1623
    %v1905 = vunpack.c.l.b16 %v1624
    %v1906 = vunpack.c.h.b16 %v1624
    %v1907 = vunpack.c.l.b16 %v1625
    %v1908 = vunpack.c.h.b16 %v1625
    %v1909 = vunpack.c.l.b16 %v1626
    %v1910 = vunpack.c.h.b16 %v1626
    %v1911 = vunpack.c.l.b16 %v1627
    %v1912 = vunpack.c.h.b16 %v1627
    %v1913 = vunpack.c.l.b16 %v1628
    %v1914 = vunpack.c.h.b16 %v1628
    %v1915 = vunpack.c.l.b16 %v1629
    %v1916 = vunpack.c.h.b16 %v1629
    %v1917 = vunpack.c.l.b16 %v1630
    %v1918 = vunpack.c.h.b16 %v1630
    %v1919 = vunpack.c.l.b16 %v1631
    %v1920 = vunpack.c.h.b16 %v1631
    %v1921 = vunpack.c.l.b16 %v1632
    %v1922 = vunpack.c.h.b16 %v1632
    %v1923 = vunpack.c.l.b16 %v1633
    %v1924 = vunpack.c.h.b16 %v1633
    %v1925 = vunpack.c.l.b16 %v1634
    %v1926 = vunpack.c.h.b16 %v1634
    %v1927 = vunpack.c.l.b16 %v1635
    %v1928 = vunpack.c.h.b16 %v1635
    %v1929 = vunpack.c.l.b16 %v1636
    %v1930 = vunpack.c.h.b16 %v1636
    %v1931 = vunpack.c.l.b16 %v1637
    %v1932 = vunpack.c.h.b16 %v1637
    %v1933 = vunpack.c.l.b16 %v1638
    %v1934 = vunpack.c.h.b16 %v1638
    %v1935 = vunpack.c.l.b16 %v1639
    %v1936 = vunpack.c.h.b16 %v1639
    %v1937 = vunpack.c.l.b16 %v1640
    %v1938 = vunpack.c.h.b16 %v1640
    %v1939 = vunpack.c.l.b16 %v1641
    %v1940 = vunpack.c.h.b16 %v1641
    %v1941 = vunpack.c.l.b16 %v1642
    %v1942 = vunpack.c.h.b16 %v1642
    %v1943 = vunpack.c.l.b16 %v1643
    %v1944 = vunpack.c.h.b16 %v1643
    %v1945 = vunpack.c.l.b16 %v1644
    %v1946 = vunpack.c.h.b16 %v1644
    %v1947 = vunpack.c.l.b16 %v1645
    %v1948 = vunpack.c.h.b16 %v1645
    %v1949 = vunpack.c.l.b16 %v1646
    %v1950 = vunpack.c.h.b16 %v1646
    %v1951 = vunpack.c.l.b16 %v1647
    %v1952 = vunpack.c.h.b16 %v1647
    %v1953 = vunpack.c.l.b16 %v1648
    %v1954 = vunpack.c.h.b16 %v1648
    %v1955 = vunpack.c.l.b16 %v1649
    %v1956 = vunpack.c.h.b16 %v1649
    %v1957 = vunpack.c.l.b16 %v1650
    %v1958 = vunpack.c.h.b16 %v1650
    %v1959 = vunpack.c.l.b16 %v1651
    %v1960 = vunpack.c.h.b16 %v1651
    %v1961 = vunpack.c.l.b16 %v1652
    %v1962 = vunpack.c.h.b16 %v1652
    %v1963 = vunpack.c.l.b16 %v1653
    %v1964 = vunpack.c.h.b16 %v1653
    %v1965 = vunpack.c.l.b16 %v1654
    %v1966 = vunpack.c.h.b16 %v1654
    %v1967 = vunpack.c.l.b16 %v1655
    %v1968 = vunpack.c.h.b16 %v1655
    %v1969 = vunpack.c.l.b16 %v1656
    %v1970 = vunpack.c.h.b16 %v1656
    %v1971 = vunpack.c.l.b16 %v1657
    %v1972 = vunpack.c.h.b16 %v1657
    %v1973 = vunpack.c.l.b16 %v1658
    %v1974 = vunpack.c.h.b16 %v1658
    %v1975 = vunpack.c.l.b16 %v1659
    %v1976 = vunpack.c.h.b16 %v1659
    %v1977 = vunpack.c.l.b16 %v1660
    %v1978 = vunpack.c.h.b16 %v1660
    %v1979 = vunpack.c.l.b16 %v1661
    %v1980 = vunpack.c.h.b16 %v1661
    %v1981 = vunpack.c.l.b16 %v1662
    %v1982 = vunpack.c.h.b16 %v1662
    %v1983 = vunpack.c.l.b16 %v1663
    %v1984 = vunpack.c.h.b16 %v1663
    %v1985 = vunpack.c.l.b16 %v1664
    %v1986 = vunpack.c.h.b16 %v1664
    %v1987 = vunpack.c.l.b16 %v1665
    %v1988 = vunpack.c.h.b16 %v1665
    %v1989 = vunpack.c.l.b16 %v1666
    %v1990 = vunpack.c.h.b16 %v1666
    %v1991 = vunpack.c.l.b16 %v1667
    %v1992 = vunpack.c.h.b16 %v1667
    %v1993 = vunpack.c.l.b16 %v1668
    %v1994 = vunpack.c.h.b16 %v1668
    %v1995 = vunpack.c.l.b16 %v1669
    %v1996 = vunpack.c.h.b16 %v1669
    %v1997 = vunpack.c.l.b16 %v1670
    %v1998 = vunpack.c.h.b16 %v1670
    %v1999 = vunpack.c.l.b16 %v1671
    %v2000 = vunpack.c.h.b16 %v1671
    %v2001 = vunpack.c.l.b16 %v1672
    %v2002 = vunpack.c.h.b16 %v1672
    %v2003 = vunpack.c.l.b16 %v1673
    %v2004 = vunpack.c.h.b16 %v1673
    %v2005 = vunpack.c.l.b16 %v1674
    %v2006 = vunpack.c.h.b16 %v1674
    %v2007 = vunpack.c.l.b16 %v1675
    %v2008 = vunpack.c.h.b16 %v1675
    %v2009 = vunpack.c.l.b16 %v1676
    %v2010 = vunpack.c.h.b16 %v1676
    %v2011 = vunpack.c.l.b16 %v1677
    %v2012 = vunpack.c.h.b16 %v1677
    %v2013 = vunpack.c.l.b16 %v1678
    %v2014 = vunpack.c.h.b16 %v1678
    %v2015 = vunpack.c.l.b16 %v1679
    %v2016 = vunpack.c.h.b16 %v1679
    %v2017 = vunpack.c.l.b16 %v1680
    %v2018 = vunpack.c.h.b16 %v1680
    %v2019 = vunpack.c.l.b16 %v1681
    %v2020 = vunpack.c.h.b16 %v1681
    %v2021 = vunpack.c.l.b16 %v1682
    %v2022 = vunpack.c.h.b16 %v1682
    %v2023 = vunpack.c.l.b16 %v1683
    %v2024 = vunpack.c.h.b16 %v1683
    %v2025 = vunpack.c.l.b16 %v1684
    %v2026 = vunpack.c.h.b16 %v1684
    %v2027 = vunpack.c.l.b16 %v1685
    %v2028 = vunpack.c.h.b16 %v1685
    %v2029 = vunpack.c.l.b16 %v1686
    %v2030 = vunpack.c.h.b16 %v1686
    %v2031 = vunpack.c.l.b16 %v1687
    %v2032 = vunpack.c.h.b16 %v1687
    %v2033 = vunpack.c.l.b16 %v1688
    %v2034 = vunpack.c.h.b16 %v1688
    %v2035 = vunpack.c.l.b16 %v1689
    %v2036 = vunpack.c.h.b16 %v1689
    %v2037 = vunpack.c.l.b16 %v1690
    %v2038 = vunpack.c.h.b16 %v1690
    %v2039 = vunpack.c.l.b16 %v1691
    %v2040 = vunpack.c.h.b16 %v1691
    %v2041 = vunpack.c.l.b16 %v1692
    %v2042 = vunpack.c.h.b16 %v1692
    %v2043 = vunpack.c.l.b16 %v1693
    %v2044 = vunpack.c.h.b16 %v1693
    %v2045 = vunpack.c.l.b16 %v1694
    %v2046 = vunpack.c.h.b16 %v1694
    %v2047 = vunpack.c.l.b16 %v1695
    %v2048 = vunpack.c.h.b16 %v1695
    %v2049 = vunpack.c.l.b16 %v1696
    %v2050 = vunpack.c.h.b16 %v1696
    %v2051 = vunpack.c.l.b16 %v1697
    %v2052 = vunpack.c.h.b16 %v1697
    %v2053 = vunpack.c.l.b16 %v1698
    %v2054 = vunpack.c.h.b16 %v1698
    %v2055 = vunpack.c.l.b16 %v1699
    %v2056 = vunpack.c.h.b16 %v1699
    %v2057 = vunpack.c.l.b16 %v1700
    %v2058 = vunpack.c.h.b16 %v1700
    %v2059 = vunpack.c.l.b16 %v1701
    %v2060 = vunpack.c.h.b16 %v1701
    %v2061 = vunpack.c.l.b16 %v1702
    %v2062 = vunpack.c.h.b16 %v1702
    %v2063 = vunpack.c.l.b16 %v1703
    %v2064 = vunpack.c.h.b16 %v1703
    %v2065 = vunpack.c.l.b16 %v1704
    %v2066 = vunpack.c.h.b16 %v1704
    %v2067 = vunpack.c.l.b16 %v1705
    %v2068 = vunpack.c.h.b16 %v1705
    %v2069 = vunpack.c.l.b16 %v1706
    %v2070 = vunpack.c.h.b16 %v1706
    %v2071 = vunpack.c.l.b16 %v1707
    %v2072 = vunpack.c.h.b16 %v1707
    %v2073 = vunpack.c.l.b16 %v1708
    %v2074 = vunpack.c.h.b16 %v1708
    %v2075 = vunpack.c.l.b16 %v1709
    %v2076 = vunpack.c.h.b16 %v1709
    %v2077 = vunpack.c.l.b16 %v1710
    %v2078 = vunpack.c.h.b16 %v1710
    %v2079 = vunpack.c.l.b16 %v1711
    %v2080 = vunpack.c.h.b16 %v1711
    %v2081 = vunpack.c.l.b16 %v1712
    %v2082 = vunpack.c.h.b16 %v1712
    %v2083 = vunpack.c.l.b16 %v1713
    %v2084 = vunpack.c.h.b16 %v1713
    %v2085 = vunpack.c.l.b16 %v1714
    %v2086 = vunpack.c.h.b16 %v1714
    %v2087 = vunpack.c.l.b16 %v1715
    %v2088 = vunpack.c.h.b16 %v1715
    %v2089 = vunpack.c.l.b16 %v1716
    %v2090 = vunpack.c.h.b16 %v1716
    %v2091 = vunpack.c.l.b16 %v1717
    %v2092 = vunpack.c.h.b16 %v1717
    %v2093 = vunpack.c.l.b16 %v1718
    %v2094 = vunpack.c.h.b16 %v1718
    %v2095 = vunpack.c.l.b16 %v1719
    %v2096 = vunpack.c.h.b16 %v1719
    %v2097 = vunpack.c.l.b16 %v1720
    %v2098 = vunpack.c.h.b16 %v1720
    %v2099 = vunpack.c.l.b16 %v1721
    %v2100 = vunpack.c.h.b16 %v1721
    %v2101 = vunpack.c.l.b16 %v1722
    %v2102 = vunpack.c.h.b16 %v1722
    %v2103 = vunpack.c.l.b16 %v1723
    %v2104 = vunpack.c.h.b16 %v1723
    %v2105 = vunpack.c.l.b16 %v1724
    %v2106 = vunpack.c.h.b16 %v1724
    %v2107 = vunpack.c.l.b16 %v1725
    %v2108 = vunpack.c.h.b16 %v1725
    %v2109 = vunpack.c.l.b16 %v1726
    %v2110 = vunpack.c.h.b16 %v1726
    %v2111 = vunpack.c.l.b16 %v1727
    %v2112 = vunpack.c.h.b16 %v1727
    %v2113 = vunpack.c.l.b16 %v1728
    %v2114 = vunpack.c.h.b16 %v1728
    %v2115 = vunpack.c.l.b16 %v1729
    %v2116 = vunpack.c.h.b16 %v1729
    %v2117 = vunpack.c.l.b16 %v1730
    %v2118 = vunpack.c.h.b16 %v1730
    %v2119 = vunpack.c.l.b16 %v1731
    %v2120 = vunpack.c.h.b16 %v1731
    %v2121 = vunpack.c.l.b16 %v1732
    %v2122 = vunpack.c.h.b16 %v1732
    %v2123 = vunpack.c.l.b16 %v1733
    %v2124 = vunpack.c.h.b16 %v1733
    %v2125 = vunpack.c.l.b16 %v1734
    %v2126 = vunpack.c.h.b16 %v1734
    %v2127 = vunpack.c.l.b16 %v1735
    %v2128 = vunpack.c.h.b16 %v1735
    %v2129 = vunpack.c.l.b16 %v1736
    %v2130 = vunpack.c.h.b16 %v1736
    %v2131 = vunpack.c.l.b16 %v1737
    %v2132 = vunpack.c.h.b16 %v1737
    %v2133 = vunpack.c.l.b16 %v1738
    %v2134 = vunpack.c.h.b16 %v1738
    %v2135 = vunpack.c.l.b16 %v1739
    %v2136 = vunpack.c.h.b16 %v1739
    %v2137 = vunpack.c.l.b16 %v1740
    %v2138 = vunpack.c.h.b16 %v1740
    %v2139 = vunpack.c.l.b16 %v1741
    %v2140 = vunpack.c.h.b16 %v1741
    %v2141 = vunpack.c.l.b16 %v1742
    %v2142 = vunpack.c.h.b16 %v1742
    %v2143 = vunpack.c.l.b16 %v1743
    %v2144 = vunpack.c.h.b16 %v1743
    %v2145 = vunpack.c.l.b16 %v1744
    %v2146 = vunpack.c.h.b16 %v1744
    %v2147 = vunpack.c.l.b16 %v1745
    %v2148 = vunpack.c.h.b16 %v1745
    %v2149 = vunpack.c.l.b16 %v1746
    %v2150 = vunpack.c.h.b16 %v1746
    %v2151 = vunpack.c.l.b16 %v1747
    %v2152 = vunpack.c.h.b16 %v1747
    %v2153 = vunpack.c.l.b16 %v1748
    %v2154 = vunpack.c.h.b16 %v1748
    %v2155 = vpack.c.b16 %v1903, %v1899
    %v2156 = vpack.c.b16 %v1904, %v1900
    %v2157 = vpack.c.b16 %v1905, %v1901
    %v2158 = vpack.c.b16 %v1906, %v1902
    %v2159 = vpack.c.b16 %v1911, %v1907
    %v2160 = vpack.c.b16 %v1912, %v1908
    %v2161 = vpack.c.b16 %v1913, %v1909
    %v2162 = vpack.c.b16 %v1914, %v1910
    %v2163 = vpack.c.b16 %v1919, %v1915
    %v2164 = vpack.c.b16 %v1920, %v1916
    %v2165 = vpack.c.b16 %v1921, %v1917
    %v2166 = vpack.c.b16 %v1922, %v1918
    %v2167 = vpack.c.b16 %v1927, %v1923
    %v2168 = vpack.c.b16 %v1928, %v1924
    %v2169 = vpack.c.b16 %v1929, %v1925
    %v2170 = vpack.c.b16 %v1930, %v1926
    %v2171 = vpack.c.b16 %v1935, %v1931
    %v2172 = vpack.c.b16 %v1936, %v1932
    %v2173 = vpack.c.b16 %v1937, %v1933
    %v2174 = vpack.c.b16 %v1938, %v1934
    %v2175 = vpack.c.b16 %v1943, %v1939
    %v2176 = vpack.c.b16 %v1944, %v1940
    %v2177 = vpack.c.b16 %v1945, %v1941
    %v2178 = vpack.c.b16 %v1946, %v1942
    %v2179 = vpack.c.b16 %v1951, %v1947
    %v2180 = vpack.c.b16 %v1952, %v1948
    %v2181 = vpack.c.b16 %v1953, %v1949
    %v2182 = vpack.c.b16 %v1954, %v1950
    %v2183 = vpack.c.b16 %v1959, %v1955
    %v2184 = vpack.c.b16 %v1960, %v1956
    %v2185 = vpack.c.b16 %v1961, %v1957
    %v2186 = vpack.c.b16 %v1962, %v1958
    %v2187 = vpack.c.b16 %v1967, %v1963
    %v2188 = vpack.c.b16 %v1968, %v1964
    %v2189 = vpack.c.b16 %v1969, %v1965
    %v2190 = vpack.c.b16 %v1970, %v1966
    %v2191 = vpack.c.b16 %v1975, %v1971
    %v2192 = vpack.c.b16 %v1976, %v1972
    %v2193 = vpack.c.b16 %v1977, %v1973
    %v2194 = vpack.c.b16 %v1978, %v1974
    %v2195 = vpack.c.b16 %v1983, %v1979
    %v2196 = vpack.c.b16 %v1984, %v1980
    %v2197 = vpack.c.b16 %v1985, %v1981
    %v2198 = vpack.c.b16 %v1986, %v1982
    %v2199 = vpack.c.b16 %v1991, %v1987
    %v2200 = vpack.c.b16 %v1992, %v1988
    %v2201 = vpack.c.b16 %v1993, %v1989
    %v2202 = vpack.c.b16 %v1994, %v1990
    %v2203 = vpack.c.b16 %v1999, %v1995
    %v2204 = vpack.c.b16 %v2000, %v1996
    %v2205 = vpack.c.b16 %v2001, %v1997
    %v2206 = vpack.c.b16 %v2002, %v1998
    %v2207 = vpack.c.b16 %v2007, %v2003
    %v2208 = vpack.c.b16 %v2008, %v2004
    %v2209 = vpack.c.b16 %v2009, %v2005
    %v2210 = vpack.c.b16 %v2010, %v2006
    %v2211 = vpack.c.b16 %v2015, %v2011
    %v2212 = vpack.c.b16 %v2016, %v2012
    %v2213 = vpack.c.b16 %v2017, %v2013
    %v2214 = vpack.c.b16 %v2018, %v2014
    %v2215 = vpack.c.b16 %v2023, %v2019
    %v2216 = vpack.c.b16 %v2024, %v2020
    %v2217 = vpack.c.b16 %v2025, %v2021
    %v2218 = vpack.c.b16 %v2026, %v2022
    %v2219 = vpack.c.b16 %v2031, %v2027
    %v2220 = vpack.c.b16 %v2032, %v2028
    %v2221 = vpack.c.b16 %v2033, %v2029
    %v2222 = vpack.c.b16 %v2034, %v2030
    %v2223 = vpack.c.b16 %v2039, %v2035
    %v2224 = vpack.c.b16 %v2040, %v2036
    %v2225 = vpack.c.b16 %v2041, %v2037
    %v2226 = vpack.c.b16 %v2042, %v2038
    %v2227 = vpack.c.b16 %v2047, %v2043
    %v2228 = vpack.c.b16 %v2048, %v2044
    %v2229 = vpack.c.b16 %v2049, %v2045
    %v2230 = vpack.c.b16 %v2050, %v2046
    %v2231 = vpack.c.b16 %v2055, %v2051
    %v2232 = vpack.c.b16 %v2056, %v2052
    %v2233 = vpack.c.b16 %v2057, %v2053
    %v2234 = vpack.c.b16 %v2058, %v2054
    %v2235 = vpack.c.b16 %v2063, %v2059
    %v2236 = vpack.c.b16 %v2064, %v2060
    %v2237 = vpack.c.b16 %v2065, %v2061
    %v2238 = vpack.c.b16 %v2066, %v2062
    %v2239 = vpack.c.b16 %v2071, %v2067
    %v2240 = vpack.c.b16 %v2072, %v2068
    %v2241 = vpack.c.b16 %v2073, %v2069
    %v2242 = vpack.c.b16 %v2074, %v2070
    %v2243 = vpack.c.b16 %v2079, %v2075
    %v2244 = vpack.c.b16 %v2080, %v2076
    %v2245 = vpack.c.b16 %v2081, %v2077
    %v2246 = vpack.c.b16 %v2082, %v2078
    %v2247 = vpack.c.b16 %v2087, %v2083
    %v2248 = vpack.c.b16 %v2088, %v2084
    %v2249 = vpack.c.b16 %v2089, %v2085
    %v2250 = vpack.c.b16 %v2090, %v2086
    %v2251 = vpack.c.b16 %v2095, %v2091
    %v2252 = vpack.c.b16 %v2096, %v2092
    %v2253 = vpack.c.b16 %v2097, %v2093
    %v2254 = vpack.c.b16 %v2098, %v2094
    %v2255 = vpack.c.b16 %v2103, %v2099
    %v2256 = vpack.c.b16 %v2104, %v2100
    %v2257 = vpack.c.b16 %v2105, %v2101
    %v2258 = vpack.c.b16 %v2106, %v2102
    %v2259 = vpack.c.b16 %v2111, %v2107
    %v2260 = vpack.c.b16 %v2112, %v2108
    %v2261 = vpack.c.b16 %v2113, %v2109
    %v2262 = vpack.c.b16 %v2114, %v2110
    %v2263 = vpack.c.b16 %v2119, %v2115
    %v2264 = vpack.c.b16 %v2120, %v2116
    %v2265 = vpack.c.b16 %v2121, %v2117
    %v2266 = vpack.c.b16 %v2122, %v2118
    %v2267 = vpack.c.b16 %v2127, %v2123
    %v2268 = vpack.c.b16 %v2128, %v2124
    %v2269 = vpack.c.b16 %v2129, %v2125
    %v2270 = vpack.c.b16 %v2130, %v2126
    %v2271 = vpack.c.b16 %v2135, %v2131
    %v2272 = vpack.c.b16 %v2136, %v2132
    %v2273 = vpack.c.b16 %v2137, %v2133
    %v2274 = vpack.c.b16 %v2138, %v2134
    %v2275 = vpack.c.b16 %v2143, %v2139
    %v2276 = vpack.c.b16 %v2144, %v2140
    %v2277 = vpack.c.b16 %v2145, %v2141
    %v2278 = vpack.c.b16 %v2146, %v2142
    %v2279 = vpack.c.b16 %v2151, %v2147
    %v2280 = vpack.c.b16 %v2152, %v2148
    %v2281 = vpack.c.b16 %v2153, %v2149
    %v2282 = vpack.c.b16 %v2154, %v2150
    %2411 = vmatprep.subr.bf16.mxu0 %v2156
    %2412 = vmatpush1.bf16.msra.mxu0 %v2155
    %2413 = vmatprep.subr.bf16.mxu0 %v2160
    %2414 = vmatpush1.bf16.msra.mxu0 %v2159
    %2415 = vmatprep.subr.bf16.mxu0 %v2164
    %2416 = vmatpush1.bf16.msra.mxu0 %v2163
    %2417 = vmatprep.subr.bf16.mxu0 %v2168
    %2418 = vmatpush1.bf16.msra.mxu0 %v2167
    %2419 = vmatprep.subr.bf16.mxu0 %v2172
    %2420 = vmatpush1.bf16.msra.mxu0 %v2171
    %2421 = vmatprep.subr.bf16.mxu0 %v2176
    %2422 = vmatpush1.bf16.msra.mxu0 %v2175
    %2423 = vmatprep.subr.bf16.mxu0 %v2180
    %2424 = vmatpush1.bf16.msra.mxu0 %v2179
    %2425 = vmatprep.subr.bf16.mxu0 %v2184
    %2426 = vmatpush1.bf16.msra.mxu0 %v2183
    %2427 = vmatprep.subr.bf16.mxu0 %v2188
    %2428 = vmatpush1.bf16.msra.mxu0 %v2187
    %2429 = vmatprep.subr.bf16.mxu0 %v2192
    %2430 = vmatpush1.bf16.msra.mxu0 %v2191
    %2431 = vmatprep.subr.bf16.mxu0 %v2196
    %2432 = vmatpush1.bf16.msra.mxu0 %v2195
    %2433 = vmatprep.subr.bf16.mxu0 %v2200
    %2434 = vmatpush1.bf16.msra.mxu0 %v2199
    %2435 = vmatprep.subr.bf16.mxu0 %v2204
    %2436 = vmatpush1.bf16.msra.mxu0 %v2203
    %2437 = vmatprep.subr.bf16.mxu0 %v2208
    %2438 = vmatpush1.bf16.msra.mxu0 %v2207
    %2439 = vmatprep.subr.bf16.mxu0 %v2212
    %2440 = vmatpush1.bf16.msra.mxu0 %v2211
    %2441 = vmatprep.subr.bf16.mxu0 %v2216
    %2442 = vmatpush1.bf16.msra.mxu0 %v2215
    %2443 = vmatprep.mubr.bf16.mxu0 %v1618
    %2444 = vmatmul.mubr.bf16.gmra.mrb[0].mxu0 %v1617
    %v2445 = vpop.f32.mrb[0].mxu0
    %v2446 = vadd.f32 %v1754, %v2445
    %v2447 = vpop.f32.mrb[0].mxu0
    %v2448 = vadd.f32 %v1758, %v2447
    %v2449 = vpop.f32.mrb[0].mxu0
    %v2450 = vpop.f32.mrb[0].mxu0
    %2451 = vdwg.mxu0
    %2452 = vmatprep.subr.bf16.mxu0 %v2220
    %2453 = vmatpush1.bf16.msra.mxu0 %v2219
    %2454 = vmatprep.subr.bf16.mxu0 %v2224
    %2455 = vmatpush1.bf16.msra.mxu0 %v2223
    %2456 = vmatprep.subr.bf16.mxu0 %v2228
    %2457 = vmatpush1.bf16.msra.mxu0 %v2227
    %2458 = vmatprep.subr.bf16.mxu0 %v2232
    %2459 = vmatpush1.bf16.msra.mxu0 %v2231
    %2460 = vmatprep.subr.bf16.mxu0 %v2236
    %2461 = vmatpush1.bf16.msra.mxu0 %v2235
    %2462 = vmatprep.subr.bf16.mxu0 %v2240
    %2463 = vmatpush1.bf16.msra.mxu0 %v2239
    %2464 = vmatprep.subr.bf16.mxu0 %v2244
    %2465 = vmatpush1.bf16.msra.mxu0 %v2243
    %2466 = vmatprep.subr.bf16.mxu0 %v2248
    %2467 = vmatpush1.bf16.msra.mxu0 %v2247
    %2468 = vmatprep.subr.bf16.mxu0 %v2252
    %2469 = vmatpush1.bf16.msra.mxu0 %v2251
    %2470 = vmatprep.subr.bf16.mxu0 %v2256
    %2471 = vmatpush1.bf16.msra.mxu0 %v2255
    %2472 = vmatprep.subr.bf16.mxu0 %v2260
    %2473 = vmatpush1.bf16.msra.mxu0 %v2259
    %2474 = vmatprep.subr.bf16.mxu0 %v2264
    %2475 = vmatpush1.bf16.msra.mxu0 %v2263
    %2476 = vmatprep.subr.bf16.mxu0 %v2268
    %2477 = vmatpush1.bf16.msra.mxu0 %v2267
    %2478 = vmatprep.subr.bf16.mxu0 %v2272
    %2479 = vmatpush1.bf16.msra.mxu0 %v2271
    %2480 = vmatprep.subr.bf16.mxu0 %v2276
    %2481 = vmatpush1.bf16.msra.mxu0 %v2275
    %2482 = vmatprep.subr.bf16.mxu0 %v2280
    %2483 = vmatpush1.bf16.msra.mxu0 %v2279
    %2484 = vmatprep.mubr.bf16.mxu0 %v1620
    %2485 = vmatmul.mubr.bf16.gmra.mrb[0].mxu0 %v1619
    %v2486 = vpop.f32.mrb[0].mxu0
    %v2487 = vadd.f32 %v2446, %v2486
    %v2488 = vpop.f32.mrb[0].mxu0
    %v2489 = vadd.f32 %v2448, %v2488
    %v2490 = vpop.f32.mrb[0].mxu0
    %v2491 = vpop.f32.mrb[0].mxu0
    %2492 = vdwg.mxu0
    %2493 = vmatprep.subr.bf16.mxu0 %v2158
    %2494 = vmatpush1.bf16.msra.mxu0 %v2157
    %2495 = vmatprep.subr.bf16.mxu0 %v2162
    %2496 = vmatpush1.bf16.msra.mxu0 %v2161
    %2497 = vmatprep.subr.bf16.mxu0 %v2166
    %2498 = vmatpush1.bf16.msra.mxu0 %v2165
    %2499 = vmatprep.subr.bf16.mxu0 %v2170
    %2500 = vmatpush1.bf16.msra.mxu0 %v2169
    %2501 = vmatprep.subr.bf16.mxu0 %v2174
    %2502 = vmatpush1.bf16.msra.mxu0 %v2173
    %2503 = vmatprep.subr.bf16.mxu0 %v2178
    %2504 = vmatpush1.bf16.msra.mxu0 %v2177
    %2505 = vmatprep.subr.bf16.mxu0 %v2182
    %2506 = vmatpush1.bf16.msra.mxu0 %v2181
    %2507 = vmatprep.subr.bf16.mxu0 %v2186
    %2508 = vmatpush1.bf16.msra.mxu0 %v2185
    %2509 = vmatprep.subr.bf16.mxu0 %v2190
    %2510 = vmatpush1.bf16.msra.mxu0 %v2189
    %2511 = vmatprep.subr.bf16.mxu0 %v2194
    %2512 = vmatpush1.bf16.msra.mxu0 %v2193
    %2513 = vmatprep.subr.bf16.mxu0 %v2198
    %2514 = vmatpush1.bf16.msra.mxu0 %v2197
    %2515 = vmatprep.subr.bf16.mxu0 %v2202
    %2516 = vmatpush1.bf16.msra.mxu0 %v2201
    %2517 = vmatprep.subr.bf16.mxu0 %v2206
    %2518 = vmatpush1.bf16.msra.mxu0 %v2205
    %2519 = vmatprep.subr.bf16.mxu0 %v2210
    %2520 = vmatpush1.bf16.msra.mxu0 %v2209
    %2521 = vmatprep.subr.bf16.mxu0 %v2214
    %2522 = vmatpush1.bf16.msra.mxu0 %v2213
    %2523 = vmatprep.subr.bf16.mxu0 %v2218
    %2524 = vmatpush1.bf16.msra.mxu0 %v2217
    %2525 = vmatprep.mubr.bf16.mxu0 %v1618
    %2526 = vmatmul.mubr.bf16.gmra.mrb[0].mxu0 %v1617
    %v2527 = vpop.f32.mrb[0].mxu0
    %v2528 = vadd.f32 %v1762, %v2527
    %v2529 = vpop.f32.mrb[0].mxu0
    %v2530 = vadd.f32 %v1766, %v2529
    %v2531 = vpop.f32.mrb[0].mxu0
    %v2532 = vpop.f32.mrb[0].mxu0
    %2533 = vdwg.mxu0
    %2534 = vmatprep.subr.bf16.mxu0 %v2222
    %2535 = vmatpush1.bf16.msra.mxu0 %v2221
    %2536 = vmatprep.subr.bf16.mxu0 %v2226
    %2537 = vmatpush1.bf16.msra.mxu0 %v2225
    %2538 = vmatprep.subr.bf16.mxu0 %v2230
    %2539 = vmatpush1.bf16.msra.mxu0 %v2229
    %2540 = vmatprep.subr.bf16.mxu0 %v2234
    %2541 = vmatpush1.bf16.msra.mxu0 %v2233
    %2542 = vmatprep.subr.bf16.mxu0 %v2238
    %2543 = vmatpush1.bf16.msra.mxu0 %v2237
    %2544 = vmatprep.subr.bf16.mxu0 %v2242
    %2545 = vmatpush1.bf16.msra.mxu0 %v2241
    %2546 = vmatprep.subr.bf16.mxu0 %v2246
    %2547 = vmatpush1.bf16.msra.mxu0 %v2245
    %2548 = vmatprep.subr.bf16.mxu0 %v2250
    %2549 = vmatpush1.bf16.msra.mxu0 %v2249
    %2550 = vmatprep.subr.bf16.mxu0 %v2254
    %2551 = vmatpush1.bf16.msra.mxu0 %v2253
    %2552 = vmatprep.subr.bf16.mxu0 %v2258
    %2553 = vmatpush1.bf16.msra.mxu0 %v2257
    %2554 = vmatprep.subr.bf16.mxu0 %v2262
    %2555 = vmatpush1.bf16.msra.mxu0 %v2261
    %2556 = vmatprep.subr.bf16.mxu0 %v2266
    %2557 = vmatpush1.bf16.msra.mxu0 %v2265
    %2558 = vmatprep.subr.bf16.mxu0 %v2270
    %2559 = vmatpush1.bf16.msra.mxu0 %v2269
    %2560 = vmatprep.subr.bf16.mxu0 %v2274
    %2561 = vmatpush1.bf16.msra.mxu0 %v2273
    %2562 = vmatprep.subr.bf16.mxu0 %v2278
    %2563 = vmatpush1.bf16.msra.mxu0 %v2277
    %2564 = vmatprep.subr.bf16.mxu0 %v2282
    %2565 = vmatpush1.bf16.msra.mxu0 %v2281
    %2566 = vmatprep.mubr.bf16.mxu0 %v1620
    %2567 = vmatmul.mubr.bf16.gmra.mrb[0].mxu0 %v1619
    %v2568 = vpop.f32.mrb[0].mxu0
    %v2569 = vadd.f32 %v2528, %v2568
    %v2570 = vpop.f32.mrb[0].mxu0
    %v2571 = vadd.f32 %v2530, %v2570
    %v2572 = vpop.f32.mrb[0].mxu0
    %v2573 = vpop.f32.mrb[0].mxu0
    %2574 = vdwg.mxu0
    %v2575 = vmax.f32 %v2487, 0.0
    %v2576 = vmax.f32 %v2489, 0.0
    %v2577 = vmax.f32 %v2569, 0.0
    %v2578 = vmax.f32 %v2571, 0.0
    %v2579 = vpack.c.bf16 %v2575, %v2575
    %v2580 = vpack.c.bf16 %v2576, %v2576
    %v2581 = vpack.c.bf16 %v2577, %v2577
    %v2582 = vpack.c.bf16 %v2578, %v2578
    %v2583 = vld [vmem:[%s5] sm:$0xf]
    %v2584 = vld [vmem:[%s5 + $0x4] sm:$0xf]
    %v2585 = vld [vmem:[%s5 + $0x8] sm:$0xf]
    %v2586 = vld [vmem:[%s5 + $0xc] sm:$0xf]
    %v2587 = vld [vmem:[%s5 + $0x10] sm:$0xf]
    %v2588 = vld [vmem:[%s5 + $0x14] sm:$0xf]
    %v2589 = vld [vmem:[%s5 + $0x18] sm:$0xf]
    %v2590 = vld [vmem:[%s5 + $0x1c] sm:$0xf]
    %v2591 = vld [vmem:[%s5 + $0x20] sm:$0xf]
    %v2592 = vld [vmem:[%s5 + $0x24] sm:$0xf]
    %v2593 = vld [vmem:[%s5 + $0x28] sm:$0xf]
    %v2594 = vld [vmem:[%s5 + $0x2c] sm:$0xf]
    %v2595 = vld [vmem:[%s5 + $0x30] sm:$0xf]
    %v2596 = vld [vmem:[%s5 + $0x34] sm:$0xf]
    %v2597 = vld [vmem:[%s5 + $0x38] sm:$0xf]
    %v2598 = vld [vmem:[%s5 + $0x3c] sm:$0xf]
    %v2599 = vld [vmem:[%s5 + $0x40] sm:$0xf]
    %v2600 = vld [vmem:[%s5 + $0x44] sm:$0xf]
    %v2601 = vld [vmem:[%s5 + $0x48] sm:$0xf]
    %v2602 = vld [vmem:[%s5 + $0x4c] sm:$0xf]
    %v2603 = vld [vmem:[%s5 + $0x50] sm:$0xf]
    %v2604 = vld [vmem:[%s5 + $0x54] sm:$0xf]
    %v2605 = vld [vmem:[%s5 + $0x58] sm:$0xf]
    %v2606 = vld [vmem:[%s5 + $0x5c] sm:$0xf]
    %v2607 = vld [vmem:[%s5 + $0x60] sm:$0xf]
    %v2608 = vld [vmem:[%s5 + $0x64] sm:$0xf]
    %v2609 = vld [vmem:[%s5 + $0x68] sm:$0xf]
    %v2610 = vld [vmem:[%s5 + $0x6c] sm:$0xf]
    %v2611 = vld [vmem:[%s5 + $0x70] sm:$0xf]
    %v2612 = vld [vmem:[%s5 + $0x74] sm:$0xf]
    %v2613 = vld [vmem:[%s5 + $0x78] sm:$0xf]
    %v2614 = vld [vmem:[%s5 + $0x7c] sm:$0xf]
    %v2615 = vld [vmem:[%s5 + $0x80] sm:$0xf]
    %v2616 = vld [vmem:[%s5 + $0x84] sm:$0xf]
    %v2617 = vld [vmem:[%s5 + $0x88] sm:$0xf]
    %v2618 = vld [vmem:[%s5 + $0x8c] sm:$0xf]
    %v2619 = vld [vmem:[%s5 + $0x90] sm:$0xf]
    %v2620 = vld [vmem:[%s5 + $0x94] sm:$0xf]
    %v2621 = vld [vmem:[%s5 + $0x98] sm:$0xf]
    %v2622 = vld [vmem:[%s5 + $0x9c] sm:$0xf]
    %v2623 = vld [vmem:[%s5 + $0xa0] sm:$0xf]
    %v2624 = vld [vmem:[%s5 + $0xa4] sm:$0xf]
    %v2625 = vld [vmem:[%s5 + $0xa8] sm:$0xf]
    %v2626 = vld [vmem:[%s5 + $0xac] sm:$0xf]
    %v2627 = vld [vmem:[%s5 + $0xb0] sm:$0xf]
    %v2628 = vld [vmem:[%s5 + $0xb4] sm:$0xf]
    %v2629 = vld [vmem:[%s5 + $0xb8] sm:$0xf]
    %v2630 = vld [vmem:[%s5 + $0xbc] sm:$0xf]
    %v2631 = vld [vmem:[%s5 + $0xc0] sm:$0xf]
    %v2632 = vld [vmem:[%s5 + $0xc4] sm:$0xf]
    %v2633 = vld [vmem:[%s5 + $0xc8] sm:$0xf]
    %v2634 = vld [vmem:[%s5 + $0xcc] sm:$0xf]
    %v2635 = vld [vmem:[%s5 + $0xd0] sm:$0xf]
    %v2636 = vld [vmem:[%s5 + $0xd4] sm:$0xf]
    %v2637 = vld [vmem:[%s5 + $0xd8] sm:$0xf]
    %v2638 = vld [vmem:[%s5 + $0xdc] sm:$0xf]
    %v2639 = vld [vmem:[%s5 + $0xe0] sm:$0xf]
    %v2640 = vld [vmem:[%s5 + $0xe4] sm:$0xf]
    %v2641 = vld [vmem:[%s5 + $0xe8] sm:$0xf]
    %v2642 = vld [vmem:[%s5 + $0xec] sm:$0xf]
    %v2643 = vld [vmem:[%s5 + $0xf0] sm:$0xf]
    %v2644 = vld [vmem:[%s5 + $0xf4] sm:$0xf]
    %v2645 = vld [vmem:[%s5 + $0xf8] sm:$0xf]
    %v2646 = vld [vmem:[%s5 + $0xfc] sm:$0xf]
    %v2647 = vld [vmem:[%s6] sm:$0x1]
    %v2649 = vlaneseq
    %v2650 = vshrl.u32 %v2649, 7
    %v2651 = vsub.s32 0, %v2650
    %v2652 = vrot.slane %v2647, %v2651
    %v2718 = vunpack.c.l.b16 %v2583
    %v2719 = vunpack.c.l.b16 %v2584
    %v2720 = vunpack.c.l.b16 %v2585
    %v2721 = vunpack.c.l.b16 %v2586
    %v2722 = vunpack.c.l.b16 %v2587
    %v2723 = vunpack.c.l.b16 %v2588
    %v2724 = vunpack.c.l.b16 %v2589
    %v2725 = vunpack.c.l.b16 %v2590
    %v2726 = vunpack.c.l.b16 %v2591
    %v2727 = vunpack.c.l.b16 %v2592
    %v2728 = vunpack.c.l.b16 %v2593
    %v2729 = vunpack.c.l.b16 %v2594
    %v2730 = vunpack.c.l.b16 %v2595
    %v2731 = vunpack.c.l.b16 %v2596
    %v2732 = vunpack.c.l.b16 %v2597
    %v2733 = vunpack.c.l.b16 %v2598
    %v2734 = vunpack.c.l.b16 %v2599
    %v2735 = vunpack.c.l.b16 %v2600
    %v2736 = vunpack.c.l.b16 %v2601
    %v2737 = vunpack.c.l.b16 %v2602
    %v2738 = vunpack.c.l.b16 %v2603
    %v2739 = vunpack.c.l.b16 %v2604
    %v2740 = vunpack.c.l.b16 %v2605
    %v2741 = vunpack.c.l.b16 %v2606
    %v2742 = vunpack.c.l.b16 %v2607
    %v2743 = vunpack.c.l.b16 %v2608
    %v2744 = vunpack.c.l.b16 %v2609
    %v2745 = vunpack.c.l.b16 %v2610
    %v2746 = vunpack.c.l.b16 %v2611
    %v2747 = vunpack.c.l.b16 %v2612
    %v2748 = vunpack.c.l.b16 %v2613
    %v2749 = vunpack.c.l.b16 %v2614
    %v2750 = vunpack.c.l.b16 %v2615
    %v2751 = vunpack.c.l.b16 %v2616
    %v2752 = vunpack.c.l.b16 %v2617
    %v2753 = vunpack.c.l.b16 %v2618
    %v2754 = vunpack.c.l.b16 %v2619
    %v2755 = vunpack.c.l.b16 %v2620
    %v2756 = vunpack.c.l.b16 %v2621
    %v2757 = vunpack.c.l.b16 %v2622
    %v2758 = vunpack.c.l.b16 %v2623
    %v2759 = vunpack.c.l.b16 %v2624
    %v2760 = vunpack.c.l.b16 %v2625
    %v2761 = vunpack.c.l.b16 %v2626
    %v2762 = vunpack.c.l.b16 %v2627
    %v2763 = vunpack.c.l.b16 %v2628
    %v2764 = vunpack.c.l.b16 %v2629
    %v2765 = vunpack.c.l.b16 %v2630
    %v2766 = vunpack.c.l.b16 %v2631
    %v2767 = vunpack.c.l.b16 %v2632
    %v2768 = vunpack.c.l.b16 %v2633
    %v2769 = vunpack.c.l.b16 %v2634
    %v2770 = vunpack.c.l.b16 %v2635
    %v2771 = vunpack.c.l.b16 %v2636
    %v2772 = vunpack.c.l.b16 %v2637
    %v2773 = vunpack.c.l.b16 %v2638
    %v2774 = vunpack.c.l.b16 %v2639
    %v2775 = vunpack.c.l.b16 %v2640
    %v2776 = vunpack.c.l.b16 %v2641
    %v2777 = vunpack.c.l.b16 %v2642
    %v2778 = vunpack.c.l.b16 %v2643
    %v2779 = vunpack.c.l.b16 %v2644
    %v2780 = vunpack.c.l.b16 %v2645
    %v2781 = vunpack.c.l.b16 %v2646
    %v2782 = vpack.c.b16 %v2719, %v2718
    %v2783 = vpack.c.b16 %v2721, %v2720
    %v2784 = vpack.c.b16 %v2723, %v2722
    %v2785 = vpack.c.b16 %v2725, %v2724
    %v2786 = vpack.c.b16 %v2727, %v2726
    %v2787 = vpack.c.b16 %v2729, %v2728
    %v2788 = vpack.c.b16 %v2731, %v2730
    %v2789 = vpack.c.b16 %v2733, %v2732
    %v2790 = vpack.c.b16 %v2735, %v2734
    %v2791 = vpack.c.b16 %v2737, %v2736
    %v2792 = vpack.c.b16 %v2739, %v2738
    %v2793 = vpack.c.b16 %v2741, %v2740
    %v2794 = vpack.c.b16 %v2743, %v2742
    %v2795 = vpack.c.b16 %v2745, %v2744
    %v2796 = vpack.c.b16 %v2747, %v2746
    %v2797 = vpack.c.b16 %v2749, %v2748
    %v2798 = vpack.c.b16 %v2751, %v2750
    %v2799 = vpack.c.b16 %v2753, %v2752
    %v2800 = vpack.c.b16 %v2755, %v2754
    %v2801 = vpack.c.b16 %v2757, %v2756
    %v2802 = vpack.c.b16 %v2759, %v2758
    %v2803 = vpack.c.b16 %v2761, %v2760
    %v2804 = vpack.c.b16 %v2763, %v2762
    %v2805 = vpack.c.b16 %v2765, %v2764
    %v2806 = vpack.c.b16 %v2767, %v2766
    %v2807 = vpack.c.b16 %v2769, %v2768
    %v2808 = vpack.c.b16 %v2771, %v2770
    %v2809 = vpack.c.b16 %v2773, %v2772
    %v2810 = vpack.c.b16 %v2775, %v2774
    %v2811 = vpack.c.b16 %v2777, %v2776
    %v2812 = vpack.c.b16 %v2779, %v2778
    %v2813 = vpack.c.b16 %v2781, %v2780
    %2846 = vmatprep.subr.bf16.mxu0 0
    %2847 = vmatpush1.bf16.msra.mxu0 %v2782
    %2848 = vmatprep.subr.bf16.mxu0 0
    %2849 = vmatpush1.bf16.msra.mxu0 %v2783
    %2850 = vmatprep.subr.bf16.mxu0 0
    %2851 = vmatpush1.bf16.msra.mxu0 %v2784
    %2852 = vmatprep.subr.bf16.mxu0 0
    %2853 = vmatpush1.bf16.msra.mxu0 %v2785
    %2854 = vmatprep.subr.bf16.mxu0 0
    %2855 = vmatpush1.bf16.msra.mxu0 %v2786
    %2856 = vmatprep.subr.bf16.mxu0 0
    %2857 = vmatpush1.bf16.msra.mxu0 %v2787
    %2858 = vmatprep.subr.bf16.mxu0 0
    %2859 = vmatpush1.bf16.msra.mxu0 %v2788
    %2860 = vmatprep.subr.bf16.mxu0 0
    %2861 = vmatpush1.bf16.msra.mxu0 %v2789
    %2862 = vmatprep.subr.bf16.mxu0 0
    %2863 = vmatpush1.bf16.msra.mxu0 %v2790
    %2864 = vmatprep.subr.bf16.mxu0 0
    %2865 = vmatpush1.bf16.msra.mxu0 %v2791
    %2866 = vmatprep.subr.bf16.mxu0 0
    %2867 = vmatpush1.bf16.msra.mxu0 %v2792
    %2868 = vmatprep.subr.bf16.mxu0 0
    %2869 = vmatpush1.bf16.msra.mxu0 %v2793
    %2870 = vmatprep.subr.bf16.mxu0 0
    %2871 = vmatpush1.bf16.msra.mxu0 %v2794
    %2872 = vmatprep.subr.bf16.mxu0 0
    %2873 = vmatpush1.bf16.msra.mxu0 %v2795
    %2874 = vmatprep.subr.bf16.mxu0 0
    %2875 = vmatpush1.bf16.msra.mxu0 %v2796
    %2876 = vmatprep.subr.bf16.mxu0 0
    %2877 = vmatpush1.bf16.msra.mxu0 %v2797
    %2878 = vmatprep.mubr.bf16.mxu0 %v2580
    %2879 = vmatmul.mubr.bf16.gmra.mrb[0].mxu0 %v2579
    %v2880 = vpop.f32.mrb[0].mxu0
    %v2881 = vadd.f32 %v2652, %v2880
    %v2882 = vpop.f32.mrb[0].mxu0
    %v2883 = vpop.f32.mrb[0].mxu0
    %v2884 = vpop.f32.mrb[0].mxu0
    %2885 = vdwg.mxu0
    %2886 = vmatprep.subr.bf16.mxu0 0
    %2887 = vmatpush1.bf16.msra.mxu0 %v2798
    %2888 = vmatprep.subr.bf16.mxu0 0
    %2889 = vmatpush1.bf16.msra.mxu0 %v2799
    %2890 = vmatprep.subr.bf16.mxu0 0
    %2891 = vmatpush1.bf16.msra.mxu0 %v2800
    %2892 = vmatprep.subr.bf16.mxu0 0
    %2893 = vmatpush1.bf16.msra.mxu0 %v2801
    %2894 = vmatprep.subr.bf16.mxu0 0
    %2895 = vmatpush1.bf16.msra.mxu0 %v2802
    %2896 = vmatprep.subr.bf16.mxu0 0
    %2897 = vmatpush1.bf16.msra.mxu0 %v2803
    %2898 = vmatprep.subr.bf16.mxu0 0
    %2899 = vmatpush1.bf16.msra.mxu0 %v2804
    %2900 = vmatprep.subr.bf16.mxu0 0
    %2901 = vmatpush1.bf16.msra.mxu0 %v2805
    %2902 = vmatprep.subr.bf16.mxu0 0
    %2903 = vmatpush1.bf16.msra.mxu0 %v2806
    %2904 = vmatprep.subr.bf16.mxu0 0
    %2905 = vmatpush1.bf16.msra.mxu0 %v2807
    %2906 = vmatprep.subr.bf16.mxu0 0
    %2907 = vmatpush1.bf16.msra.mxu0 %v2808
    %2908 = vmatprep.subr.bf16.mxu0 0
    %2909 = vmatpush1.bf16.msra.mxu0 %v2809
    %2910 = vmatprep.subr.bf16.mxu0 0
    %2911 = vmatpush1.bf16.msra.mxu0 %v2810
    %2912 = vmatprep.subr.bf16.mxu0 0
    %2913 = vmatpush1.bf16.msra.mxu0 %v2811
    %2914 = vmatprep.subr.bf16.mxu0 0
    %2915 = vmatpush1.bf16.msra.mxu0 %v2812
    %2916 = vmatprep.subr.bf16.mxu0 0
    %2917 = vmatpush1.bf16.msra.mxu0 %v2813
    %2918 = vmatprep.mubr.bf16.mxu0 %v2582
    %2919 = vmatmul.mubr.bf16.gmra.mrb[0].mxu0 %v2581
    %v2920 = vpop.f32.mrb[0].mxu0
    %v2921 = vadd.f32 %v2881, %v2920
    %v2922 = vpop.f32.mrb[0].mxu0
    %v2923 = vpop.f32.mrb[0].mxu0
    %v2924 = vpop.f32.mrb[0].mxu0
    %2925 = vdwg.mxu0
    %v2926 = vpack.c.bf16 %v2921, %v2921
    %2927 = vst [vmem:[%s7] sm:$0xf] %v2926
    // Predicated region
    $region38: #{neural_network_forward.1} parent=1 // pred_check
      _
    $region39: #{neural_network_forward.1} parent=1 // pred_check_branch
      %2929 = sbr.rel (0) target = $region41
    $region40: #{neural_network_forward.1} parent=1 // pred_region
      _
    $region41: #{neural_network_forward.1} parent=1 // pred_fallthru
      _
    // Predicated region
    $region42: #{neural_network_forward.1} parent=1 // pred_check
      _
    $region43: #{neural_network_forward.1} parent=1 // pred_check_branch
      %2931 = sbr.rel (0) target = $region45
    $region44: #{neural_network_forward.1} parent=1 // pred_region
      _
    $region45: #{neural_network_forward.1} parent=1 // pred_fallthru
      _
    %2932 = vsyncpa [#allocation3], 1
    %2933 = vsyncpa [#allocation5], 1

</llo_original>
